<compile_context>
chip_gen: v7x
topology: tpu7x:2x2x1
jax: 0.10.0
libtpu: 0.0.40
codegen_flags: <defaults>
</compile_context>

<pallas_src>
import math
import jax
import jax.numpy as jnp
from jax.experimental import pallas as pl
from jax.experimental.pallas import tpu as pltpu

BN_EPS = 1e-5
LANE = 128


def _round_up(n, m):
    return ((n + m - 1) // m) * m


def _linear(x, w_ref, b_ref):
    # x: (B, in) f32, w_ref: (in, out) bf16, b_ref: (1, out) f32
    # bf16 MXU matmul, f32 accumulation, f32 bias add.
    return jnp.dot(x.astype(jnp.bfloat16), w_ref[...],
                   preferred_element_type=jnp.float32) + b_ref[...]


def _bn_relu(y, ones_row, inv_b):
    # BatchNorm1d in training mode: biased batch variance, gamma=1, beta=0.
    # Batch-axis sums done on the MXU ((1,B) @ (B,N)) to keep the XLU free.
    mu = jnp.dot(ones_row, y, preferred_element_type=jnp.float32) * inv_b
    d = y - mu
    var = jnp.dot(ones_row, d * d, preferred_element_type=jnp.float32) * inv_b
    yhat = d * jax.lax.rsqrt(var + BN_EPS)
    return jnp.maximum(yhat, 0.0)


def nb_autoencoder_kernel(
    x_ref, sf_ref,
    we1_ref, be1_ref, we2_ref, be2_ref,        # encoder
    wl_ref, bl_ref,                            # latent layer
    wd1_ref, bd1_ref, wd2_ref, bd2_ref,        # decoder
    wh_ref, bh_ref,                            # fused heads: [mean | theta]
    latent_out_ref, heads_out_ref,
):
    B = x_ref.shape[0]
    ones_row = jnp.ones((1, B), jnp.float32)
    inv_b = jnp.float32(1.0 / B)

    x = x_ref[...]

    # ---- encoder ----
    h = _bn_relu(_linear(x, we1_ref, be1_ref), ones_row, inv_b)
    h = _bn_relu(_linear(h, we2_ref, be2_ref), ones_row, inv_b)

    # ---- latent ----
    latent = _bn_relu(_linear(h, wl_ref, bl_ref), ones_row, inv_b)
    latent_out_ref[...] = latent.astype(latent_out_ref.dtype)

    # ---- decoder ----
    d = _bn_relu(_linear(latent, wd1_ref, bd1_ref), ones_row, inv_b)
    d = _bn_relu(_linear(d, wd2_ref, bd2_ref), ones_row, inv_b)

    # ---- fused output heads: one matmul, lane-dense (B, 2*Dp) slab ----
    heads_pre = _linear(d, wh_ref, bh_ref)          # (B, 2*Dp) f32
    half = heads_pre.shape[1] // 2                  # static, multiple of 128

    mean_pre = heads_pre[:, :half]
    theta_pre = heads_pre[:, half:]

    # mean head: exp activation, scaled by size factors (B, 1)
    mean = jnp.exp(mean_pre) * sf_ref[...]

    # theta head: PyTorch softplus (linear above threshold=20)
    sp = jnp.log1p(jnp.exp(jnp.minimum(theta_pre, 20.0)))
    theta = jnp.where(theta_pre > 20.0, theta_pre, sp)

    heads_out_ref[:, :half] = mean.astype(heads_out_ref.dtype)
    heads_out_ref[:, half:] = theta.astype(heads_out_ref.dtype)


def _pad2(a, rows, cols):
    r, c = a.shape
    return jnp.pad(a, ((0, rows - r), (0, cols - c)))


def nb_autoencoder_forward(x, size_factors, params):
    """x: (B, D) float32, size_factors: (B,) float32, params: dict of (W, b) pairs.

    Weights are stored as (in_dim, out_dim) (pre-transposed vs torch.nn.Linear),
    biases as (1, out_dim).
    """
    B, D = x.shape
    E1 = params["we1"].shape[1]
    E2 = params["we2"].shape[1]
    L = params["wl"].shape[1]
    D1 = params["wd1"].shape[1]
    D2 = params["wd2"].shape[1]

    # lane-pad every layer width to a multiple of 128
    Dp = _round_up(D, LANE)
    E1p = _round_up(E1, LANE)
    E2p = _round_up(E2, LANE)
    Lp = _round_up(L, LANE)
    D1p = _round_up(D1, LANE)
    D2p = _round_up(D2, LANE)

    x_p = _pad2(x.astype(jnp.float32), B, Dp)
    sf = size_factors.reshape(B, 1).astype(jnp.float32)

    def wpad(name, rin, rout):
        return _pad2(params["w" + name].astype(jnp.float32), rin, rout).astype(jnp.bfloat16)

    def bpad(name, rout):
        return _pad2(params["b" + name].astype(jnp.float32), 1, rout)

    we1 = wpad("e1", Dp, E1p);  be1 = bpad("e1", E1p)
    we2 = wpad("e2", E1p, E2p); be2 = bpad("e2", E2p)
    wl  = wpad("l",  E2p, Lp);  bl  = bpad("l",  Lp)
    wd1 = wpad("d1", Lp, D1p);  bd1 = bpad("d1", D1p)
    wd2 = wpad("d2", D1p, D2p); bd2 = bpad("d2", D2p)

    # fuse output + theta heads: [mean | theta] along the output axis
    wo = _pad2(params["wo"].astype(jnp.float32), D2p, Dp)
    wt = _pad2(params["wt"].astype(jnp.float32), D2p, Dp)
    wh = jnp.concatenate([wo, wt], axis=1).astype(jnp.bfloat16)       # (D2p, 2*Dp)
    bo = _pad2(params["bo"].astype(jnp.float32), 1, Dp)
    bt = _pad2(params["bt"].astype(jnp.float32), 1, Dp)
    bh = jnp.concatenate([bo, bt], axis=1)                            # (1, 2*Dp)

    flat_inputs = [
        x_p, sf,
        we1, be1, we2, be2,
        wl, bl,
        wd1, bd1, wd2, bd2,
        wh, bh,
    ]

    # explicit VMEM budget: resident inputs + outputs, 2x headroom, clamped
    def _nbytes(a):
        return int(a.size) * a.dtype.itemsize

    out_bytes = B * Lp * 4 + B * 2 * Dp * 4
    total_bytes = sum(_nbytes(a) for a in flat_inputs) + out_bytes
    vmem_limit = min(max(2 * total_bytes + (4 << 20), 16 << 20), 48 << 20)

    vmem_spec = pl.BlockSpec(memory_space=pltpu.MemorySpace.VMEM)

    latent_p, heads_p = pl.pallas_call(
        nb_autoencoder_kernel,
        out_shape=(
            jax.ShapeDtypeStruct((B, Lp), jnp.float32),
            jax.ShapeDtypeStruct((B, 2 * Dp), jnp.float32),
        ),
        in_specs=[vmem_spec] * len(flat_inputs),
        out_specs=(vmem_spec, vmem_spec),
        compiler_params=pltpu.CompilerParams(vmem_limit_bytes=vmem_limit),
    )(*flat_inputs)

    latent = latent_p[:, :L]
    mean = heads_p[:, :D]
    theta = heads_p[:, Dp:Dp + D]
    return latent, (mean, theta)


# ------------------------- parameter initialization -------------------------

def _xavier_uniform(key, in_dim, out_dim):
    # torch.nn.init.xavier_uniform_ on a (out, in) weight; stored here as (in, out).
    limit = math.sqrt(6.0 / (in_dim + out_dim))
    return jax.random.uniform(key, (in_dim, out_dim), jnp.float32, -limit, limit)


def _bias_default(key, in_dim, out_dim):
    # torch Linear default bias init: U(-1/sqrt(fan_in), 1/sqrt(fan_in)); shape (1, out).
    bound = 1.0 / math.sqrt(in_dim)
    return jax.random.uniform(key, (1, out_dim), jnp.float32, -bound, bound)


def make_params(key, input_dim, enc_dims, latent_dim, dec_dims):
    dims = []
    names = []
    prev = input_dim
    for i, d in enumerate(enc_dims):
        dims.append((prev, d)); names.append(f"e{i+1}"); prev = d
    dims.append((prev, latent_dim)); names.append("l"); prev = latent_dim
    for i, d in enumerate(dec_dims):
        dims.append((prev, d)); names.append(f"d{i+1}"); prev = d
    dims.append((prev, input_dim)); names.append("o")
    dims.append((prev, input_dim)); names.append("t")

    params = {}
    keys = jax.random.split(key, 2 * len(dims))
    for i, ((din, dout), name) in enumerate(zip(dims, names)):
        params["w" + name] = _xavier_uniform(keys[2 * i], din, dout)
        params["b" + name] = _bias_default(keys[2 * i + 1], din, dout)
    return params


if __name__ == "__main__":
    # Small shapes consistent with the module's forward.
    B = 8            # batch
    D = 32           # input_dim (input_d.shape[1])
    ENC = [24, 16]   # encoder_layers_dim
    LAT = 8          # latent_layer_out_dim
    DEC = [16, 24]   # decoder_layers_dim

    key = jax.random.PRNGKey(0)
    k_x, k_sf, k_p = jax.random.split(key, 3)

    # scRNA-seq-like nonnegative counts for x, positive size factors.
    x = jax.random.uniform(k_x, (B, D), jnp.float32, 0.0, 5.0)
    size_factors = jax.random.uniform(k_sf, (B,), jnp.float32, 0.5, 1.5)

    params = make_params(k_p, D, ENC, LAT, DEC)

    latent, (mean, theta) = nb_autoencoder_forward(x, size_factors, params)
    jax.block_until_ready((latent, mean, theta))

    assert latent.shape == (B, LAT)
    assert mean.shape == (B, D)
    assert theta.shape == (B, D)
    assert bool(jnp.all(jnp.isfinite(latent)))
    assert bool(jnp.all(jnp.isfinite(mean)))
    assert bool(jnp.all(jnp.isfinite(theta)))
    assert bool(jnp.all(mean >= 0.0))
    assert bool(jnp.all(theta >= 0.0))

    print("KERNEL_OK")
</pallas_src>

<mosaic_0001>
module attributes {stable_mosaic.version = 11 : i64} {
  func.func @nb_autoencoder_kernel(%arg0: memref<8x128xf32, #tpu.memory_space<vmem>>, %arg1: memref<8x1xf32, #tpu.memory_space<vmem>>, %arg2: memref<128x128xbf16, #tpu.memory_space<vmem>>, %arg3: memref<1x128xf32, #tpu.memory_space<vmem>>, %arg4: memref<128x128xbf16, #tpu.memory_space<vmem>>, %arg5: memref<1x128xf32, #tpu.memory_space<vmem>>, %arg6: memref<128x128xbf16, #tpu.memory_space<vmem>>, %arg7: memref<1x128xf32, #tpu.memory_space<vmem>>, %arg8: memref<128x128xbf16, #tpu.memory_space<vmem>>, %arg9: memref<1x128xf32, #tpu.memory_space<vmem>>, %arg10: memref<128x128xbf16, #tpu.memory_space<vmem>>, %arg11: memref<1x128xf32, #tpu.memory_space<vmem>>, %arg12: memref<128x256xbf16, #tpu.memory_space<vmem>>, %arg13: memref<1x256xf32, #tpu.memory_space<vmem>>, %arg14: memref<8x128xf32, #tpu.memory_space<vmem>>, %arg15: memref<8x256xf32, #tpu.memory_space<vmem>>) attributes {dimension_semantics = [], scalar_prefetch = 0 : i64, scratch_operands = 0 : i64, tpu.core_type = #tpu.core_type<tc>} {
    %cst = arith.constant 1.000000e+00 : f32
    %0 = vector.broadcast %cst : f32 to vector<1x8xf32>
    %c0 = arith.constant 0 : index
    %c0_0 = arith.constant 0 : index
    %1 = vector.load %arg0[%c0, %c0_0] : memref<8x128xf32, #tpu.memory_space<vmem>>, vector<8x128xf32>
    %2 = arith.truncf %1 : vector<8x128xf32> to vector<8x128xbf16>
    %c0_1 = arith.constant 0 : index
    %c0_2 = arith.constant 0 : index
    %3 = vector.load %arg2[%c0_1, %c0_2] : memref<128x128xbf16, #tpu.memory_space<vmem>>, vector<128x128xbf16>
    %cst_3 = arith.constant dense<0.000000e+00> : vector<8x128xf32>
    %4 = tpu.matmul %2, %3, %cst_3 {dimension_numbers = #tpu.dot_dimension_numbers<[1], [0], [0], [1], [0, 0, 1, 1], [], []>} : vector<8x128xbf16>, vector<128x128xbf16>, vector<8x128xf32> -> vector<8x128xf32>
    %c0_4 = arith.constant 0 : index
    %c0_5 = arith.constant 0 : index
    %5 = vector.load %arg3[%c0_4, %c0_5] : memref<1x128xf32, #tpu.memory_space<vmem>>, vector<1x128xf32>
    %6 = vector.broadcast %5 : vector<1x128xf32> to vector<8x128xf32>
    %7 = arith.addf %4, %6 : vector<8x128xf32>
    %cst_6 = arith.constant dense<0.000000e+00> : vector<1x128xf32>
    %8 = tpu.matmul %0, %7, %cst_6 {dimension_numbers = #tpu.dot_dimension_numbers<[1], [0], [0], [1], [0, 0, 1, 1], [], []>} : vector<1x8xf32>, vector<8x128xf32>, vector<1x128xf32> -> vector<1x128xf32>
    %cst_7 = arith.constant 1.250000e-01 : f32
    %9 = vector.broadcast %cst_7 : f32 to vector<1x128xf32>
    %10 = arith.mulf %8, %9 : vector<1x128xf32>
    %11 = vector.broadcast %10 : vector<1x128xf32> to vector<8x128xf32>
    %12 = arith.subf %7, %11 : vector<8x128xf32>
    %13 = arith.mulf %12, %12 : vector<8x128xf32>
    %cst_8 = arith.constant dense<0.000000e+00> : vector<1x128xf32>
    %14 = tpu.matmul %0, %13, %cst_8 {dimension_numbers = #tpu.dot_dimension_numbers<[1], [0], [0], [1], [0, 0, 1, 1], [], []>} : vector<1x8xf32>, vector<8x128xf32>, vector<1x128xf32> -> vector<1x128xf32>
    %cst_9 = arith.constant 1.250000e-01 : f32
    %15 = vector.broadcast %cst_9 : f32 to vector<1x128xf32>
    %16 = arith.mulf %14, %15 : vector<1x128xf32>
    %cst_10 = arith.constant 9.99999974E-6 : f32
    %17 = vector.broadcast %cst_10 : f32 to vector<1x128xf32>
    %18 = arith.addf %16, %17 : vector<1x128xf32>
    %19 = math.rsqrt %18 : vector<1x128xf32>
    %20 = vector.broadcast %19 : vector<1x128xf32> to vector<8x128xf32>
    %21 = arith.mulf %12, %20 : vector<8x128xf32>
    %cst_11 = arith.constant 0.000000e+00 : f32
    %22 = vector.broadcast %cst_11 : f32 to vector<8x128xf32>
    %23 = arith.maximumf %21, %22 : vector<8x128xf32>
    %24 = arith.truncf %23 : vector<8x128xf32> to vector<8x128xbf16>
    %c0_12 = arith.constant 0 : index
    %c0_13 = arith.constant 0 : index
    %25 = vector.load %arg4[%c0_12, %c0_13] : memref<128x128xbf16, #tpu.memory_space<vmem>>, vector<128x128xbf16>
    %cst_14 = arith.constant dense<0.000000e+00> : vector<8x128xf32>
    %26 = tpu.matmul %24, %25, %cst_14 {dimension_numbers = #tpu.dot_dimension_numbers<[1], [0], [0], [1], [0, 0, 1, 1], [], []>} : vector<8x128xbf16>, vector<128x128xbf16>, vector<8x128xf32> -> vector<8x128xf32>
    %c0_15 = arith.constant 0 : index
    %c0_16 = arith.constant 0 : index
    %27 = vector.load %arg5[%c0_15, %c0_16] : memref<1x128xf32, #tpu.memory_space<vmem>>, vector<1x128xf32>
    %28 = vector.broadcast %27 : vector<1x128xf32> to vector<8x128xf32>
    %29 = arith.addf %26, %28 : vector<8x128xf32>
    %cst_17 = arith.constant dense<0.000000e+00> : vector<1x128xf32>
    %30 = tpu.matmul %0, %29, %cst_17 {dimension_numbers = #tpu.dot_dimension_numbers<[1], [0], [0], [1], [0, 0, 1, 1], [], []>} : vector<1x8xf32>, vector<8x128xf32>, vector<1x128xf32> -> vector<1x128xf32>
    %cst_18 = arith.constant 1.250000e-01 : f32
    %31 = vector.broadcast %cst_18 : f32 to vector<1x128xf32>
    %32 = arith.mulf %30, %31 : vector<1x128xf32>
    %33 = vector.broadcast %32 : vector<1x128xf32> to vector<8x128xf32>
    %34 = arith.subf %29, %33 : vector<8x128xf32>
    %35 = arith.mulf %34, %34 : vector<8x128xf32>
    %cst_19 = arith.constant dense<0.000000e+00> : vector<1x128xf32>
    %36 = tpu.matmul %0, %35, %cst_19 {dimension_numbers = #tpu.dot_dimension_numbers<[1], [0], [0], [1], [0, 0, 1, 1], [], []>} : vector<1x8xf32>, vector<8x128xf32>, vector<1x128xf32> -> vector<1x128xf32>
    %cst_20 = arith.constant 1.250000e-01 : f32
    %37 = vector.broadcast %cst_20 : f32 to vector<1x128xf32>
    %38 = arith.mulf %36, %37 : vector<1x128xf32>
    %cst_21 = arith.constant 9.99999974E-6 : f32
    %39 = vector.broadcast %cst_21 : f32 to vector<1x128xf32>
    %40 = arith.addf %38, %39 : vector<1x128xf32>
    %41 = math.rsqrt %40 : vector<1x128xf32>
    %42 = vector.broadcast %41 : vector<1x128xf32> to vector<8x128xf32>
    %43 = arith.mulf %34, %42 : vector<8x128xf32>
    %cst_22 = arith.constant 0.000000e+00 : f32
    %44 = vector.broadcast %cst_22 : f32 to vector<8x128xf32>
    %45 = arith.maximumf %43, %44 : vector<8x128xf32>
    %46 = arith.truncf %45 : vector<8x128xf32> to vector<8x128xbf16>
    %c0_23 = arith.constant 0 : index
    %c0_24 = arith.constant 0 : index
    %47 = vector.load %arg6[%c0_23, %c0_24] : memref<128x128xbf16, #tpu.memory_space<vmem>>, vector<128x128xbf16>
    %cst_25 = arith.constant dense<0.000000e+00> : vector<8x128xf32>
    %48 = tpu.matmul %46, %47, %cst_25 {dimension_numbers = #tpu.dot_dimension_numbers<[1], [0], [0], [1], [0, 0, 1, 1], [], []>} : vector<8x128xbf16>, vector<128x128xbf16>, vector<8x128xf32> -> vector<8x128xf32>
    %c0_26 = arith.constant 0 : index
    %c0_27 = arith.constant 0 : index
    %49 = vector.load %arg7[%c0_26, %c0_27] : memref<1x128xf32, #tpu.memory_space<vmem>>, vector<1x128xf32>
    %50 = vector.broadcast %49 : vector<1x128xf32> to vector<8x128xf32>
    %51 = arith.addf %48, %50 : vector<8x128xf32>
    %cst_28 = arith.constant dense<0.000000e+00> : vector<1x128xf32>
    %52 = tpu.matmul %0, %51, %cst_28 {dimension_numbers = #tpu.dot_dimension_numbers<[1], [0], [0], [1], [0, 0, 1, 1], [], []>} : vector<1x8xf32>, vector<8x128xf32>, vector<1x128xf32> -> vector<1x128xf32>
    %cst_29 = arith.constant 1.250000e-01 : f32
    %53 = vector.broadcast %cst_29 : f32 to vector<1x128xf32>
    %54 = arith.mulf %52, %53 : vector<1x128xf32>
    %55 = vector.broadcast %54 : vector<1x128xf32> to vector<8x128xf32>
    %56 = arith.subf %51, %55 : vector<8x128xf32>
    %57 = arith.mulf %56, %56 : vector<8x128xf32>
    %cst_30 = arith.constant dense<0.000000e+00> : vector<1x128xf32>
    %58 = tpu.matmul %0, %57, %cst_30 {dimension_numbers = #tpu.dot_dimension_numbers<[1], [0], [0], [1], [0, 0, 1, 1], [], []>} : vector<1x8xf32>, vector<8x128xf32>, vector<1x128xf32> -> vector<1x128xf32>
    %cst_31 = arith.constant 1.250000e-01 : f32
    %59 = vector.broadcast %cst_31 : f32 to vector<1x128xf32>
    %60 = arith.mulf %58, %59 : vector<1x128xf32>
    %cst_32 = arith.constant 9.99999974E-6 : f32
    %61 = vector.broadcast %cst_32 : f32 to vector<1x128xf32>
    %62 = arith.addf %60, %61 : vector<1x128xf32>
    %63 = math.rsqrt %62 : vector<1x128xf32>
    %64 = vector.broadcast %63 : vector<1x128xf32> to vector<8x128xf32>
    %65 = arith.mulf %56, %64 : vector<8x128xf32>
    %cst_33 = arith.constant 0.000000e+00 : f32
    %66 = vector.broadcast %cst_33 : f32 to vector<8x128xf32>
    %67 = arith.maximumf %65, %66 : vector<8x128xf32>
    %c0_34 = arith.constant 0 : index
    %c0_35 = arith.constant 0 : index
    %68 = vector.load %arg14[%c0_34, %c0_35] : memref<8x128xf32, #tpu.memory_space<vmem>>, vector<8x128xf32>
    tpu.vector_store %arg14[%c0_34, %c0_35], %67 {strides = array<i32>} : memref<8x128xf32, #tpu.memory_space<vmem>>, vector<8x128xf32>,
    %69 = arith.truncf %67 : vector<8x128xf32> to vector<8x128xbf16>
    %c0_36 = arith.constant 0 : index
    %c0_37 = arith.constant 0 : index
    %70 = vector.load %arg8[%c0_36, %c0_37] : memref<128x128xbf16, #tpu.memory_space<vmem>>, vector<128x128xbf16>
    %cst_38 = arith.constant dense<0.000000e+00> : vector<8x128xf32>
    %71 = tpu.matmul %69, %70, %cst_38 {dimension_numbers = #tpu.dot_dimension_numbers<[1], [0], [0], [1], [0, 0, 1, 1], [], []>} : vector<8x128xbf16>, vector<128x128xbf16>, vector<8x128xf32> -> vector<8x128xf32>
    %c0_39 = arith.constant 0 : index
    %c0_40 = arith.constant 0 : index
    %72 = vector.load %arg9[%c0_39, %c0_40] : memref<1x128xf32, #tpu.memory_space<vmem>>, vector<1x128xf32>
    %73 = vector.broadcast %72 : vector<1x128xf32> to vector<8x128xf32>
    %74 = arith.addf %71, %73 : vector<8x128xf32>
    %cst_41 = arith.constant dense<0.000000e+00> : vector<1x128xf32>
    %75 = tpu.matmul %0, %74, %cst_41 {dimension_numbers = #tpu.dot_dimension_numbers<[1], [0], [0], [1], [0, 0, 1, 1], [], []>} : vector<1x8xf32>, vector<8x128xf32>, vector<1x128xf32> -> vector<1x128xf32>
    %cst_42 = arith.constant 1.250000e-01 : f32
    %76 = vector.broadcast %cst_42 : f32 to vector<1x128xf32>
    %77 = arith.mulf %75, %76 : vector<1x128xf32>
    %78 = vector.broadcast %77 : vector<1x128xf32> to vector<8x128xf32>
    %79 = arith.subf %74, %78 : vector<8x128xf32>
    %80 = arith.mulf %79, %79 : vector<8x128xf32>
    %cst_43 = arith.constant dense<0.000000e+00> : vector<1x128xf32>
    %81 = tpu.matmul %0, %80, %cst_43 {dimension_numbers = #tpu.dot_dimension_numbers<[1], [0], [0], [1], [0, 0, 1, 1], [], []>} : vector<1x8xf32>, vector<8x128xf32>, vector<1x128xf32> -> vector<1x128xf32>
    %cst_44 = arith.constant 1.250000e-01 : f32
    %82 = vector.broadcast %cst_44 : f32 to vector<1x128xf32>
    %83 = arith.mulf %81, %82 : vector<1x128xf32>
    %cst_45 = arith.constant 9.99999974E-6 : f32
    %84 = vector.broadcast %cst_45 : f32 to vector<1x128xf32>
    %85 = arith.addf %83, %84 : vector<1x128xf32>
    %86 = math.rsqrt %85 : vector<1x128xf32>
    %87 = vector.broadcast %86 : vector<1x128xf32> to vector<8x128xf32>
    %88 = arith.mulf %79, %87 : vector<8x128xf32>
    %cst_46 = arith.constant 0.000000e+00 : f32
    %89 = vector.broadcast %cst_46 : f32 to vector<8x128xf32>
    %90 = arith.maximumf %88, %89 : vector<8x128xf32>
    %91 = arith.truncf %90 : vector<8x128xf32> to vector<8x128xbf16>
    %c0_47 = arith.constant 0 : index
    %c0_48 = arith.constant 0 : index
    %92 = vector.load %arg10[%c0_47, %c0_48] : memref<128x128xbf16, #tpu.memory_space<vmem>>, vector<128x128xbf16>
    %cst_49 = arith.constant dense<0.000000e+00> : vector<8x128xf32>
    %93 = tpu.matmul %91, %92, %cst_49 {dimension_numbers = #tpu.dot_dimension_numbers<[1], [0], [0], [1], [0, 0, 1, 1], [], []>} : vector<8x128xbf16>, vector<128x128xbf16>, vector<8x128xf32> -> vector<8x128xf32>
    %c0_50 = arith.constant 0 : index
    %c0_51 = arith.constant 0 : index
    %94 = vector.load %arg11[%c0_50, %c0_51] : memref<1x128xf32, #tpu.memory_space<vmem>>, vector<1x128xf32>
    %95 = vector.broadcast %94 : vector<1x128xf32> to vector<8x128xf32>
    %96 = arith.addf %93, %95 : vector<8x128xf32>
    %cst_52 = arith.constant dense<0.000000e+00> : vector<1x128xf32>
    %97 = tpu.matmul %0, %96, %cst_52 {dimension_numbers = #tpu.dot_dimension_numbers<[1], [0], [0], [1], [0, 0, 1, 1], [], []>} : vector<1x8xf32>, vector<8x128xf32>, vector<1x128xf32> -> vector<1x128xf32>
    %cst_53 = arith.constant 1.250000e-01 : f32
    %98 = vector.broadcast %cst_53 : f32 to vector<1x128xf32>
    %99 = arith.mulf %97, %98 : vector<1x128xf32>
    %100 = vector.broadcast %99 : vector<1x128xf32> to vector<8x128xf32>
    %101 = arith.subf %96, %100 : vector<8x128xf32>
    %102 = arith.mulf %101, %101 : vector<8x128xf32>
    %cst_54 = arith.constant dense<0.000000e+00> : vector<1x128xf32>
    %103 = tpu.matmul %0, %102, %cst_54 {dimension_numbers = #tpu.dot_dimension_numbers<[1], [0], [0], [1], [0, 0, 1, 1], [], []>} : vector<1x8xf32>, vector<8x128xf32>, vector<1x128xf32> -> vector<1x128xf32>
    %cst_55 = arith.constant 1.250000e-01 : f32
    %104 = vector.broadcast %cst_55 : f32 to vector<1x128xf32>
    %105 = arith.mulf %103, %104 : vector<1x128xf32>
    %cst_56 = arith.constant 9.99999974E-6 : f32
    %106 = vector.broadcast %cst_56 : f32 to vector<1x128xf32>
    %107 = arith.addf %105, %106 : vector<1x128xf32>
    %108 = math.rsqrt %107 : vector<1x128xf32>
    %109 = vector.broadcast %108 : vector<1x128xf32> to vector<8x128xf32>
    %110 = arith.mulf %101, %109 : vector<8x128xf32>
    %cst_57 = arith.constant 0.000000e+00 : f32
    %111 = vector.broadcast %cst_57 : f32 to vector<8x128xf32>
    %112 = arith.maximumf %110, %111 : vector<8x128xf32>
    %113 = arith.truncf %112 : vector<8x128xf32> to vector<8x128xbf16>
    %c0_58 = arith.constant 0 : index
    %c0_59 = arith.constant 0 : index
    %114 = vector.load %arg12[%c0_58, %c0_59] : memref<128x256xbf16, #tpu.memory_space<vmem>>, vector<128x256xbf16>
    %cst_60 = arith.constant dense<0.000000e+00> : vector<8x256xf32>
    %115 = tpu.matmul %113, %114, %cst_60 {dimension_numbers = #tpu.dot_dimension_numbers<[1], [0], [0], [1], [0, 0, 1, 1], [], []>} : vector<8x128xbf16>, vector<128x256xbf16>, vector<8x256xf32> -> vector<8x256xf32>
    %c0_61 = arith.constant 0 : index
    %c0_62 = arith.constant 0 : index
    %116 = vector.load %arg13[%c0_61, %c0_62] : memref<1x256xf32, #tpu.memory_space<vmem>>, vector<1x256xf32>
    %117 = vector.broadcast %116 : vector<1x256xf32> to vector<8x256xf32>
    %118 = arith.addf %115, %117 : vector<8x256xf32>
    %119 = vector.extract_strided_slice %118 {offsets = [0, 0], sizes = [8, 128], strides = [1, 1]} : vector<8x256xf32> to vector<8x128xf32>
    %120 = vector.extract_strided_slice %118 {offsets = [0, 128], sizes = [8, 128], strides = [1, 1]} : vector<8x256xf32> to vector<8x128xf32>
    %121 = math.exp %119 : vector<8x128xf32>
    %c0_63 = arith.constant 0 : index
    %c0_64 = arith.constant 0 : index
    %122 = vector.load %arg1[%c0_63, %c0_64] : memref<8x1xf32, #tpu.memory_space<vmem>>, vector<8x1xf32>
    %123 = vector.broadcast %122 : vector<8x1xf32> to vector<8x128xf32>
    %124 = arith.mulf %121, %123 : vector<8x128xf32>
    %cst_65 = arith.constant 2.000000e+01 : f32
    %125 = vector.broadcast %cst_65 : f32 to vector<8x128xf32>
    %126 = arith.minimumf %120, %125 : vector<8x128xf32>
    %127 = math.exp %126 : vector<8x128xf32>
    %128 = math.log1p %127 : vector<8x128xf32>
    %cst_66 = arith.constant 2.000000e+01 : f32
    %129 = vector.broadcast %cst_66 : f32 to vector<8x128xf32>
    %130 = arith.cmpf ogt, %120, %129 : vector<8x128xf32>
    %131 = arith.select %130, %120, %128 : vector<8x128xi1>, vector<8x128xf32>
    %c0_67 = arith.constant 0 : index
    %c0_68 = arith.constant 0 : index
    %132 = vector.load %arg15[%c0_67, %c0_68] : memref<8x256xf32, #tpu.memory_space<vmem>>, vector<8x128xf32>
    tpu.vector_store %arg15[%c0_67, %c0_68], %124 {strides = array<i32>} : memref<8x256xf32, #tpu.memory_space<vmem>>, vector<8x128xf32>,
    %c0_69 = arith.constant 0 : index
    %c128 = arith.constant 128 : index
    %133 = vector.load %arg15[%c0_69, %c128] : memref<8x256xf32, #tpu.memory_space<vmem>>, vector<8x128xf32>
    tpu.vector_store %arg15[%c0_69, %c128], %131 {strides = array<i32>} : memref<8x256xf32, #tpu.memory_space<vmem>>, vector<8x128xf32>,
    return
  }
}

</mosaic_0001>

<llo_original>
// kernel: tpu_custom_call.1
$region0: #{tpu_custom_call.1}
  #allocation0 [shape = 'u32[]', space=smem, size = 0x4, offset = 0x4, fixed_abs, tag = 'smem constant byte address 0x4 - core index']
  #allocation1 [shape = 'u32[144,128]{1,0:T(1,128)}', space=vmem, size = 0x12000, scoped, tag = 'internal scratch']
  %s0 = inlined_call_operand.vmem [shape: f32[8,128], index: 0, kind: input, shape index: {}]
  %s1 = inlined_call_operand.vmem [shape: f32[8,1], index: 1, kind: input, shape index: {}]
  %s2 = inlined_call_operand.hbm [shape: bf16[128,128], index: 2, kind: input, shape index: {}]
  %s3 = inlined_call_operand.vmem [shape: f32[1,128], index: 3, kind: input, shape index: {}]
  %s4 = inlined_call_operand.hbm [shape: bf16[128,128], index: 4, kind: input, shape index: {}]
  %s5 = inlined_call_operand.vmem [shape: f32[1,128], index: 5, kind: input, shape index: {}]
  %s6 = inlined_call_operand.hbm [shape: bf16[128,128], index: 6, kind: input, shape index: {}]
  %s7 = inlined_call_operand.vmem [shape: f32[1,128], index: 7, kind: input, shape index: {}]
  %s8 = inlined_call_operand.hbm [shape: bf16[128,128], index: 8, kind: input, shape index: {}]
  %s9 = inlined_call_operand.vmem [shape: f32[1,128], index: 9, kind: input, shape index: {}]
  %s10 = inlined_call_operand.hbm [shape: bf16[128,128], index: 10, kind: input, shape index: {}]
  %s11 = inlined_call_operand.vmem [shape: f32[1,128], index: 11, kind: input, shape index: {}]
  %s12 = inlined_call_operand.hbm [shape: bf16[128,256], index: 12, kind: input, shape index: {}]
  %s13 = inlined_call_operand.vmem [shape: f32[1,256], index: 13, kind: input, shape index: {}]
  %s14 = inlined_call_operand.hbm [shape: f32[8,128], index: 14, kind: output, shape index: {0}]
  %s15 = inlined_call_operand.hbm [shape: f32[8,256], index: 15, kind: output, shape index: {1}]
  %16 = xla_tuple %s14, %s15
  %s17 = sld [smem:[#allocation0]]
  $region98: #{tpu_custom_call.1} parent=0
    _
  %s19 = ssub.s32 1, %s17
  %s20 = scalar_select 0, %s19, %s17
  $region1: #{tpu_custom_call.1} parent=0
    #allocation2 [shape = 'u8[32768]{0}', space=vmem, size = 0x8000, scoped, tag = 'input window, operand 2, single buffered']
    #allocation3 [shape = 's32[1]{0}', space=sflag, size = 0x4, scoped, tag = 'scoped memory for tpu_custom_call.1']
    #allocation4 [shape = 's32[1]{0}', space=sflag, size = 0x4, scoped, tag = 'scoped memory for tpu_custom_call.1']
    #allocation5 [shape = 'u8[32768]{0}', space=vmem, size = 0x8000, scoped, tag = 'input window, operand 4, single buffered']
    #allocation6 [shape = 's32[1]{0}', space=sflag, size = 0x4, scoped, tag = 'scoped memory for tpu_custom_call.1']
    #allocation7 [shape = 'u8[32768]{0}', space=vmem, size = 0x8000, scoped, tag = 'input window, operand 6, single buffered']
    #allocation8 [shape = 'u8[32768]{0}', space=vmem, size = 0x8000, scoped, tag = 'input window, operand 8, single buffered']
    #allocation9 [shape = 's32[1]{0}', space=sflag, size = 0x4, scoped, tag = 'scoped memory for tpu_custom_call.1']
    #allocation10 [shape = 'u8[32768]{0}', space=vmem, size = 0x8000, scoped, tag = 'input window, operand 10, single buffered']
    #allocation11 [shape = 'u8[65536]{0}', space=vmem, size = 0x10000, scoped, tag = 'input window, operand 12, single buffered']
    #allocation12 [shape = 's32[1]{0}', space=sflag, size = 0x4, scoped, tag = 'scoped memory for tpu_custom_call.1']
    #allocation13 [shape = 'u8[4096]{0}', space=vmem, size = 0x1000, scoped, tag = 'output window, operand 0, single buffered']
    #allocation14 [shape = 'u8[8192]{0}', space=vmem, size = 0x2000, scoped, tag = 'output window, operand 1, single buffered']
    #allocation15 [shape = 's32[1]{0}', space=sflag, size = 0x4, scoped, tag = 'scoped memory for tpu_custom_call.1']
    %21 = vsyncpa [#allocation3], 0
    %22 = vsyncpa [#allocation6], 0
    %23 = vsyncpa [#allocation9], 0
    %24 = vsyncpa [#allocation12], 0
    %25 = vsyncpa [#allocation4], 0
    %26 = vsyncpa [#allocation15], 0
    // Predicated region
    $region2: #{tpu_custom_call.1} parent=1 // pred_check
      _
    $region3: #{tpu_custom_call.1} parent=1 // pred_check_branch
      %28 = sbr.rel (0) target = $region5
    $region4: #{tpu_custom_call.1} parent=1 // pred_region
      _
    $region5: #{tpu_custom_call.1} parent=1 // pred_fallthru
      _
    // Predicated region
    $region6: #{tpu_custom_call.1} parent=1 // pred_check
      _
    $region7: #{tpu_custom_call.1} parent=1 // pred_check_branch
      %30 = sbr.rel (0) target = $region9
    $region8: #{tpu_custom_call.1} parent=1 // pred_region
      _
    $region9: #{tpu_custom_call.1} parent=1 // pred_fallthru
      _
    // Predicated region
    $region10: #{tpu_custom_call.1} parent=1 // pred_check
      _
    $region11: #{tpu_custom_call.1} parent=1 // pred_check_branch
      %32 = sbr.rel (0) target = $region13
    $region12: #{tpu_custom_call.1} parent=1 // pred_region
      %s34 = ssub.s32 1024, 1024
      %35 = vsyncadd [#allocation3], %s34
      %s36 = sshll.u32 [#allocation2], 4
      %s37 = int_to_ptr.vmem [resolvable:$true] %s36
      %42 = dma.hbm_to_vmem [thread:$0]  %s2, 1024, %s37, [#allocation3], 64, 64, 4
    $region13: #{tpu_custom_call.1} parent=1 // pred_fallthru
      _
    // Predicated region
    $region14: #{tpu_custom_call.1} parent=1 // pred_check
      _
    $region15: #{tpu_custom_call.1} parent=1 // pred_check_branch
      %44 = sbr.rel (0) target = $region17
    $region16: #{tpu_custom_call.1} parent=1 // pred_region
      _
    $region17: #{tpu_custom_call.1} parent=1 // pred_fallthru
      _
    // Predicated region
    $region18: #{tpu_custom_call.1} parent=1 // pred_check
      _
    $region19: #{tpu_custom_call.1} parent=1 // pred_check_branch
      %46 = sbr.rel (0) target = $region21
    $region20: #{tpu_custom_call.1} parent=1 // pred_region
      %s48 = ssub.s32 1024, 1024
      %49 = vsyncadd [#allocation6], %s48
      %s50 = sshll.u32 [#allocation5], 4
      %s51 = int_to_ptr.vmem [resolvable:$true] %s50
      %56 = dma.hbm_to_vmem [thread:$0]  %s4, 1024, %s51, [#allocation6], 64, 64, 4
    $region21: #{tpu_custom_call.1} parent=1 // pred_fallthru
      _
    // Predicated region
    $region22: #{tpu_custom_call.1} parent=1 // pred_check
      _
    $region23: #{tpu_custom_call.1} parent=1 // pred_check_branch
      %58 = sbr.rel (0) target = $region25
    $region24: #{tpu_custom_call.1} parent=1 // pred_region
      _
    $region25: #{tpu_custom_call.1} parent=1 // pred_fallthru
      _
    // Predicated region
    $region26: #{tpu_custom_call.1} parent=1 // pred_check
      _
    $region27: #{tpu_custom_call.1} parent=1 // pred_check_branch
      %60 = sbr.rel (0) target = $region29
    $region28: #{tpu_custom_call.1} parent=1 // pred_region
      %s62 = ssub.s32 1024, 1024
      %63 = vsyncadd [#allocation6], %s62
      %s64 = sshll.u32 [#allocation7], 4
      %s65 = int_to_ptr.vmem [resolvable:$true] %s64
      %70 = dma.hbm_to_vmem [thread:$0]  %s6, 1024, %s65, [#allocation6], 64, 64, 4
    $region29: #{tpu_custom_call.1} parent=1 // pred_fallthru
      _
    // Predicated region
    $region30: #{tpu_custom_call.1} parent=1 // pred_check
      _
    $region31: #{tpu_custom_call.1} parent=1 // pred_check_branch
      %72 = sbr.rel (0) target = $region33
    $region32: #{tpu_custom_call.1} parent=1 // pred_region
      _
    $region33: #{tpu_custom_call.1} parent=1 // pred_fallthru
      _
    // Predicated region
    $region34: #{tpu_custom_call.1} parent=1 // pred_check
      _
    $region35: #{tpu_custom_call.1} parent=1 // pred_check_branch
      %74 = sbr.rel (0) target = $region37
    $region36: #{tpu_custom_call.1} parent=1 // pred_region
      %s76 = ssub.s32 1024, 1024
      %77 = vsyncadd [#allocation9], %s76
      %s78 = sshll.u32 [#allocation8], 4
      %s79 = int_to_ptr.vmem [resolvable:$true] %s78
      %84 = dma.hbm_to_vmem [thread:$0]  %s8, 1024, %s79, [#allocation9], 64, 64, 4
    $region37: #{tpu_custom_call.1} parent=1 // pred_fallthru
      _
    // Predicated region
    $region38: #{tpu_custom_call.1} parent=1 // pred_check
      _
    $region39: #{tpu_custom_call.1} parent=1 // pred_check_branch
      %86 = sbr.rel (0) target = $region41
    $region40: #{tpu_custom_call.1} parent=1 // pred_region
      _
    $region41: #{tpu_custom_call.1} parent=1 // pred_fallthru
      _
    // Predicated region
    $region42: #{tpu_custom_call.1} parent=1 // pred_check
      _
    $region43: #{tpu_custom_call.1} parent=1 // pred_check_branch
      %88 = sbr.rel (0) target = $region45
    $region44: #{tpu_custom_call.1} parent=1 // pred_region
      %s90 = ssub.s32 1024, 1024
      %91 = vsyncadd [#allocation9], %s90
      %s92 = sshll.u32 [#allocation10], 4
      %s93 = int_to_ptr.vmem [resolvable:$true] %s92
      %98 = dma.hbm_to_vmem [thread:$0]  %s10, 1024, %s93, [#allocation9], 64, 64, 4
    $region45: #{tpu_custom_call.1} parent=1 // pred_fallthru
      _
    // Predicated region
    $region46: #{tpu_custom_call.1} parent=1 // pred_check
      _
    $region47: #{tpu_custom_call.1} parent=1 // pred_check_branch
      %100 = sbr.rel (0) target = $region49
    $region48: #{tpu_custom_call.1} parent=1 // pred_region
      _
    $region49: #{tpu_custom_call.1} parent=1 // pred_fallthru
      _
    // Predicated region
    $region50: #{tpu_custom_call.1} parent=1 // pred_check
      _
    $region51: #{tpu_custom_call.1} parent=1 // pred_check_branch
      %102 = sbr.rel (0) target = $region53
    $region52: #{tpu_custom_call.1} parent=1 // pred_region
      %s104 = ssub.s32 2048, 2048
      %105 = vsyncadd [#allocation12], %s104
      %s106 = sshll.u32 [#allocation11], 4
      %s107 = int_to_ptr.vmem [resolvable:$true] %s106
      %112 = dma.hbm_to_vmem [thread:$0]  %s12, 2048, %s107, [#allocation12], 128, 128, 8
    $region53: #{tpu_custom_call.1} parent=1 // pred_fallthru
      _
    // Predicated region
    $region54: #{tpu_custom_call.1} parent=1 // pred_check
      _
    $region55: #{tpu_custom_call.1} parent=1 // pred_check_branch
      %114 = sbr.rel (0) target = $region57
    $region56: #{tpu_custom_call.1} parent=1 // pred_region
      _
    $region57: #{tpu_custom_call.1} parent=1 // pred_fallthru
      _
    // Predicated region
    $region58: #{tpu_custom_call.1} parent=1 // pred_check
      _
    $region59: #{tpu_custom_call.1} parent=1 // pred_check_branch
      %116 = sbr.rel (0) target = $region61
    $region60: #{tpu_custom_call.1} parent=1 // pred_region
      %117 = dma.done [#allocation3], 1024
    $region61: #{tpu_custom_call.1} parent=1 // pred_fallthru
      _
    // Predicated region
    $region62: #{tpu_custom_call.1} parent=1 // pred_check
      _
    $region63: #{tpu_custom_call.1} parent=1 // pred_check_branch
      %119 = sbr.rel (0) target = $region65
    $region64: #{tpu_custom_call.1} parent=1 // pred_region
      %120 = dma.done [#allocation6], 1024
    $region65: #{tpu_custom_call.1} parent=1 // pred_fallthru
      _
    // Predicated region
    $region66: #{tpu_custom_call.1} parent=1 // pred_check
      _
    $region67: #{tpu_custom_call.1} parent=1 // pred_check_branch
      %122 = sbr.rel (0) target = $region69
    $region68: #{tpu_custom_call.1} parent=1 // pred_region
      %123 = dma.done [#allocation6], 1024
    $region69: #{tpu_custom_call.1} parent=1 // pred_fallthru
      _
    // Predicated region
    $region70: #{tpu_custom_call.1} parent=1 // pred_check
      _
    $region71: #{tpu_custom_call.1} parent=1 // pred_check_branch
      %125 = sbr.rel (0) target = $region73
    $region72: #{tpu_custom_call.1} parent=1 // pred_region
      %126 = dma.done [#allocation9], 1024
    $region73: #{tpu_custom_call.1} parent=1 // pred_fallthru
      _
    // Predicated region
    $region74: #{tpu_custom_call.1} parent=1 // pred_check
      _
    $region75: #{tpu_custom_call.1} parent=1 // pred_check_branch
      %128 = sbr.rel (0) target = $region77
    $region76: #{tpu_custom_call.1} parent=1 // pred_region
      %129 = dma.done [#allocation9], 1024
    $region77: #{tpu_custom_call.1} parent=1 // pred_fallthru
      _
    // Predicated region
    $region78: #{tpu_custom_call.1} parent=1 // pred_check
      _
    $region79: #{tpu_custom_call.1} parent=1 // pred_check_branch
      %131 = sbr.rel (0) target = $region81
    $region80: #{tpu_custom_call.1} parent=1 // pred_region
      %132 = dma.done [#allocation12], 2048
    $region81: #{tpu_custom_call.1} parent=1 // pred_fallthru
      _
    %v134 = vld [vmem:[%s0] sm:$0xff]
    %v135 = vpack.c.bf16 %v134, %v134
    %v136 = vld [vmem:[#allocation2] sm:$0xf]
    %v137 = vld [vmem:[#allocation2 + $0x4] sm:$0xf]
    %v138 = vld [vmem:[#allocation2 + $0x8] sm:$0xf]
    %v139 = vld [vmem:[#allocation2 + $0xc] sm:$0xf]
    %v140 = vld [vmem:[#allocation2 + $0x10] sm:$0xf]
    %v141 = vld [vmem:[#allocation2 + $0x14] sm:$0xf]
    %v142 = vld [vmem:[#allocation2 + $0x18] sm:$0xf]
    %v143 = vld [vmem:[#allocation2 + $0x1c] sm:$0xf]
    %v144 = vld [vmem:[#allocation2 + $0x20] sm:$0xf]
    %v145 = vld [vmem:[#allocation2 + $0x24] sm:$0xf]
    %v146 = vld [vmem:[#allocation2 + $0x28] sm:$0xf]
    %v147 = vld [vmem:[#allocation2 + $0x2c] sm:$0xf]
    %v148 = vld [vmem:[#allocation2 + $0x30] sm:$0xf]
    %v149 = vld [vmem:[#allocation2 + $0x34] sm:$0xf]
    %v150 = vld [vmem:[#allocation2 + $0x38] sm:$0xf]
    %v151 = vld [vmem:[#allocation2 + $0x3c] sm:$0xf]
    %v152 = vld [vmem:[%s3] sm:$0x1]
    %v154 = vlaneseq
    %v155 = vshrl.u32 %v154, 7
    %v156 = vsub.s32 0, %v155
    %v157 = vrot.slane %v152, %v156
    %v175 = vunpack.c.l.b16 %v136
    %v176 = vunpack.c.l.b16 %v137
    %v177 = vunpack.c.l.b16 %v138
    %v178 = vunpack.c.l.b16 %v139
    %v179 = vunpack.c.l.b16 %v140
    %v180 = vunpack.c.l.b16 %v141
    %v181 = vunpack.c.l.b16 %v142
    %v182 = vunpack.c.l.b16 %v143
    %v183 = vunpack.c.l.b16 %v144
    %v184 = vunpack.c.l.b16 %v145
    %v185 = vunpack.c.l.b16 %v146
    %v186 = vunpack.c.l.b16 %v147
    %v187 = vunpack.c.l.b16 %v148
    %v188 = vunpack.c.l.b16 %v149
    %v189 = vunpack.c.l.b16 %v150
    %v190 = vunpack.c.l.b16 %v151
    %v191 = vpack.c.b16 %v176, %v175
    %v192 = vpack.c.b16 %v178, %v177
    %v193 = vpack.c.b16 %v180, %v179
    %v194 = vpack.c.b16 %v182, %v181
    %v195 = vpack.c.b16 %v184, %v183
    %v196 = vpack.c.b16 %v186, %v185
    %v197 = vpack.c.b16 %v188, %v187
    %v198 = vpack.c.b16 %v190, %v189
    %207 = vmatprep.subr.bf16.mxu0 0
    %208 = vmatpush1.bf16.msra.mxu0 %v191
    %209 = vmatprep.subr.bf16.mxu0 0
    %210 = vmatpush1.bf16.msra.mxu0 %v192
    %211 = vmatprep.subr.bf16.mxu0 0
    %212 = vmatpush1.bf16.msra.mxu0 %v193
    %213 = vmatprep.subr.bf16.mxu0 0
    %214 = vmatpush1.bf16.msra.mxu0 %v194
    %215 = vmatprep.subr.bf16.mxu0 0
    %216 = vmatpush1.bf16.msra.mxu0 %v195
    %217 = vmatprep.subr.bf16.mxu0 0
    %218 = vmatpush1.bf16.msra.mxu0 %v196
    %219 = vmatprep.subr.bf16.mxu0 0
    %220 = vmatpush1.bf16.msra.mxu0 %v197
    %221 = vmatprep.subr.bf16.mxu0 0
    %222 = vmatpush1.bf16.msra.mxu0 %v198
    %223 = vmatprep.subr.bf16.mxu0 0
    %224 = vmatpush1.bf16.msra.mxu0 0
    %225 = vmatprep.subr.bf16.mxu0 0
    %226 = vmatpush1.bf16.msra.mxu0 0
    %227 = vmatprep.subr.bf16.mxu0 0
    %228 = vmatpush1.bf16.msra.mxu0 0
    %229 = vmatprep.subr.bf16.mxu0 0
    %230 = vmatpush1.bf16.msra.mxu0 0
    %231 = vmatprep.subr.bf16.mxu0 0
    %232 = vmatpush1.bf16.msra.mxu0 0
    %233 = vmatprep.subr.bf16.mxu0 0
    %234 = vmatpush1.bf16.msra.mxu0 0
    %235 = vmatprep.subr.bf16.mxu0 0
    %236 = vmatpush1.bf16.msra.mxu0 0
    %237 = vmatprep.subr.bf16.mxu0 0
    %238 = vmatpush1.bf16.msra.mxu0 0
    %239 = vmatprep.mubr.bf16.mxu0 0
    %240 = vmatmul.mubr.bf16.gmra.mrb[0].mxu0 %v135
    %v241 = vpop.f32.mrb[0].mxu0
    %v242 = vadd.f32 %v157, %v241
    %v243 = vpop.f32.mrb[0].mxu0
    %v244 = vpop.f32.mrb[0].mxu0
    %v245 = vpop.f32.mrb[0].mxu0
    %246 = vdwg.mxu0
    %vm247 = vcmask 64512
    %v249 = vsel %vm247, 1.0, 0
    %251 = vmatprep.subr.mxu0 0.0
    %252 = vmatpush1.msra.mxu0 %v242
    %253 = vmatprep.subr.mxu0 0.0
    %254 = vmatpush1.msra.mxu0 0.0
    %255 = vmatprep.subr.mxu0 0.0
    %256 = vmatpush1.msra.mxu0 0.0
    %257 = vmatprep.subr.mxu0 0.0
    %258 = vmatpush1.msra.mxu0 0.0
    %259 = vmatprep.subr.mxu0 0.0
    %260 = vmatpush1.msra.mxu0 0.0
    %261 = vmatprep.subr.mxu0 0.0
    %262 = vmatpush1.msra.mxu0 0.0
    %263 = vmatprep.subr.mxu0 0.0
    %264 = vmatpush1.msra.mxu0 0.0
    %265 = vmatprep.subr.mxu0 0.0
    %266 = vmatpush1.msra.mxu0 0.0
    %267 = vmatprep.subr.mxu0 0.0
    %268 = vmatpush1.msra.mxu0 0.0
    %269 = vmatprep.subr.mxu0 0.0
    %270 = vmatpush1.msra.mxu0 0.0
    %271 = vmatprep.subr.mxu0 0.0
    %272 = vmatpush1.msra.mxu0 0.0
    %273 = vmatprep.subr.mxu0 0.0
    %274 = vmatpush1.msra.mxu0 0.0
    %275 = vmatprep.subr.mxu0 0.0
    %276 = vmatpush1.msra.mxu0 0.0
    %277 = vmatprep.subr.mxu0 0.0
    %278 = vmatpush1.msra.mxu0 0.0
    %279 = vmatprep.subr.mxu0 0.0
    %280 = vmatpush1.msra.mxu0 0.0
    %281 = vmatprep.subr.mxu0 0.0
    %282 = vmatpush1.msra.mxu0 0.0
    %283 = vmatprep.subr.mxu0 0.0
    %284 = vmatpush1.msra.mxu0 0.0
    %285 = vmatprep.subr.mxu0 0.0
    %286 = vmatpush1.msra.mxu0 0.0
    %287 = vmatprep.subr.mxu0 0.0
    %288 = vmatpush1.msra.mxu0 0.0
    %289 = vmatprep.subr.mxu0 0.0
    %290 = vmatpush1.msra.mxu0 0.0
    %291 = vmatprep.subr.mxu0 0.0
    %292 = vmatpush1.msra.mxu0 0.0
    %293 = vmatprep.subr.mxu0 0.0
    %294 = vmatpush1.msra.mxu0 0.0
    %295 = vmatprep.subr.mxu0 0.0
    %296 = vmatpush1.msra.mxu0 0.0
    %297 = vmatprep.subr.mxu0 0.0
    %298 = vmatpush1.msra.mxu0 0.0
    %299 = vmatprep.subr.mxu0 0.0
    %300 = vmatpush1.msra.mxu0 0.0
    %301 = vmatprep.subr.mxu0 0.0
    %302 = vmatpush1.msra.mxu0 0.0
    %303 = vmatprep.subr.mxu0 0.0
    %304 = vmatpush1.msra.mxu0 0.0
    %305 = vmatprep.subr.mxu0 0.0
    %306 = vmatpush1.msra.mxu0 0.0
    %307 = vmatprep.subr.mxu0 0.0
    %308 = vmatpush1.msra.mxu0 0.0
    %309 = vmatprep.subr.mxu0 0.0
    %310 = vmatpush1.msra.mxu0 0.0
    %311 = vmatprep.subr.mxu0 0.0
    %312 = vmatpush1.msra.mxu0 0.0
    %313 = vmatprep.subr.mxu0 0.0
    %314 = vmatpush1.msra.mxu0 0.0
    %315 = vmatprep.mubr.f32.mxu0 0.0
    %316 = vmatmul.mubr.f32.gmra.mrb[0].mxu0 %v249
    %v317 = vpop.f32.mrb[0].mxu0
    %v318 = vadd.f32 0.0, %v317
    %v319 = vpop.f32.mrb[0].mxu0
    %320 = vdwg.mxu0
    %v321 = vmul.f32 %v318, 0.125
    %v322 = vlaneseq
    %v323 = vshrl.u32 %v322, 7
    %v324 = vsub.s32 0, %v323
    %v325 = vrot.slane %v321, %v324
    %v326 = vsub.f32 %v242, %v325
    %v327 = vmul.f32 %v326, %v326
    %328 = vmatprep.subr.mxu0 0.0
    %329 = vmatpush1.msra.mxu0 %v327
    %330 = vmatprep.subr.mxu0 0.0
    %331 = vmatpush1.msra.mxu0 0.0
    %332 = vmatprep.subr.mxu0 0.0
    %333 = vmatpush1.msra.mxu0 0.0
    %334 = vmatprep.subr.mxu0 0.0
    %335 = vmatpush1.msra.mxu0 0.0
    %336 = vmatprep.subr.mxu0 0.0
    %337 = vmatpush1.msra.mxu0 0.0
    %338 = vmatprep.subr.mxu0 0.0
    %339 = vmatpush1.msra.mxu0 0.0
    %340 = vmatprep.subr.mxu0 0.0
    %341 = vmatpush1.msra.mxu0 0.0
    %342 = vmatprep.subr.mxu0 0.0
    %343 = vmatpush1.msra.mxu0 0.0
    %344 = vmatprep.subr.mxu0 0.0
    %345 = vmatpush1.msra.mxu0 0.0
    %346 = vmatprep.subr.mxu0 0.0
    %347 = vmatpush1.msra.mxu0 0.0
    %348 = vmatprep.subr.mxu0 0.0
    %349 = vmatpush1.msra.mxu0 0.0
    %350 = vmatprep.subr.mxu0 0.0
    %351 = vmatpush1.msra.mxu0 0.0
    %352 = vmatprep.subr.mxu0 0.0
    %353 = vmatpush1.msra.mxu0 0.0
    %354 = vmatprep.subr.mxu0 0.0
    %355 = vmatpush1.msra.mxu0 0.0
    %356 = vmatprep.subr.mxu0 0.0
    %357 = vmatpush1.msra.mxu0 0.0
    %358 = vmatprep.subr.mxu0 0.0
    %359 = vmatpush1.msra.mxu0 0.0
    %360 = vmatprep.subr.mxu0 0.0
    %361 = vmatpush1.msra.mxu0 0.0
    %362 = vmatprep.subr.mxu0 0.0
    %363 = vmatpush1.msra.mxu0 0.0
    %364 = vmatprep.subr.mxu0 0.0
    %365 = vmatpush1.msra.mxu0 0.0
    %366 = vmatprep.subr.mxu0 0.0
    %367 = vmatpush1.msra.mxu0 0.0
    %368 = vmatprep.subr.mxu0 0.0
    %369 = vmatpush1.msra.mxu0 0.0
    %370 = vmatprep.subr.mxu0 0.0
    %371 = vmatpush1.msra.mxu0 0.0
    %372 = vmatprep.subr.mxu0 0.0
    %373 = vmatpush1.msra.mxu0 0.0
    %374 = vmatprep.subr.mxu0 0.0
    %375 = vmatpush1.msra.mxu0 0.0
    %376 = vmatprep.subr.mxu0 0.0
    %377 = vmatpush1.msra.mxu0 0.0
    %378 = vmatprep.subr.mxu0 0.0
    %379 = vmatpush1.msra.mxu0 0.0
    %380 = vmatprep.subr.mxu0 0.0
    %381 = vmatpush1.msra.mxu0 0.0
    %382 = vmatprep.subr.mxu0 0.0
    %383 = vmatpush1.msra.mxu0 0.0
    %384 = vmatprep.subr.mxu0 0.0
    %385 = vmatpush1.msra.mxu0 0.0
    %386 = vmatprep.subr.mxu0 0.0
    %387 = vmatpush1.msra.mxu0 0.0
    %388 = vmatprep.subr.mxu0 0.0
    %389 = vmatpush1.msra.mxu0 0.0
    %390 = vmatprep.subr.mxu0 0.0
    %391 = vmatpush1.msra.mxu0 0.0
    %392 = vmatprep.mubr.f32.mxu0 0.0
    %393 = vmatmul.mubr.f32.gmra.mrb[0].mxu0 %v249
    %v394 = vpop.f32.mrb[0].mxu0
    %v395 = vadd.f32 0.0, %v394
    %v396 = vpop.f32.mrb[0].mxu0
    %397 = vdwg.mxu0
    %v398 = vmul.f32 %v395, 0.125
    %v399 = vadd.f32 %v398, 1e-05
    %v400 = vrsqrt.pop %v399
    %v401 = vlaneseq
    %v402 = vshrl.u32 %v401, 7
    %v403 = vsub.s32 0, %v402
    %v404 = vrot.slane %v400, %v403
    %v405 = vmul.f32 %v326, %v404
    %v406 = vmax.f32 %v405, 0.0
    %v407 = vpack.c.bf16 %v406, %v406
    %v408 = vld [vmem:[#allocation5] sm:$0xf]
    %v409 = vld [vmem:[#allocation5 + $0x4] sm:$0xf]
    %v410 = vld [vmem:[#allocation5 + $0x8] sm:$0xf]
    %v411 = vld [vmem:[#allocation5 + $0xc] sm:$0xf]
    %v412 = vld [vmem:[#allocation5 + $0x10] sm:$0xf]
    %v413 = vld [vmem:[#allocation5 + $0x14] sm:$0xf]
    %v414 = vld [vmem:[#allocation5 + $0x18] sm:$0xf]
    %v415 = vld [vmem:[#allocation5 + $0x1c] sm:$0xf]
    %v416 = vld [vmem:[#allocation5 + $0x20] sm:$0xf]
    %v417 = vld [vmem:[#allocation5 + $0x24] sm:$0xf]
    %v418 = vld [vmem:[#allocation5 + $0x28] sm:$0xf]
    %v419 = vld [vmem:[#allocation5 + $0x2c] sm:$0xf]
    %v420 = vld [vmem:[#allocation5 + $0x30] sm:$0xf]
    %v421 = vld [vmem:[#allocation5 + $0x34] sm:$0xf]
    %v422 = vld [vmem:[#allocation5 + $0x38] sm:$0xf]
    %v423 = vld [vmem:[#allocation5 + $0x3c] sm:$0xf]
    %v424 = vld [vmem:[%s5] sm:$0x1]
    %v426 = vlaneseq
    %v427 = vshrl.u32 %v426, 7
    %v428 = vsub.s32 0, %v427
    %v429 = vrot.slane %v424, %v428
    %v447 = vunpack.c.l.b16 %v408
    %v448 = vunpack.c.l.b16 %v409
    %v449 = vunpack.c.l.b16 %v410
    %v450 = vunpack.c.l.b16 %v411
    %v451 = vunpack.c.l.b16 %v412
    %v452 = vunpack.c.l.b16 %v413
    %v453 = vunpack.c.l.b16 %v414
    %v454 = vunpack.c.l.b16 %v415
    %v455 = vunpack.c.l.b16 %v416
    %v456 = vunpack.c.l.b16 %v417
    %v457 = vunpack.c.l.b16 %v418
    %v458 = vunpack.c.l.b16 %v419
    %v459 = vunpack.c.l.b16 %v420
    %v460 = vunpack.c.l.b16 %v421
    %v461 = vunpack.c.l.b16 %v422
    %v462 = vunpack.c.l.b16 %v423
    %v463 = vpack.c.b16 %v448, %v447
    %v464 = vpack.c.b16 %v450, %v449
    %v465 = vpack.c.b16 %v452, %v451
    %v466 = vpack.c.b16 %v454, %v453
    %v467 = vpack.c.b16 %v456, %v455
    %v468 = vpack.c.b16 %v458, %v457
    %v469 = vpack.c.b16 %v460, %v459
    %v470 = vpack.c.b16 %v462, %v461
    %479 = vmatprep.subr.bf16.mxu0 0
    %480 = vmatpush1.bf16.msra.mxu0 %v463
    %481 = vmatprep.subr.bf16.mxu0 0
    %482 = vmatpush1.bf16.msra.mxu0 %v464
    %483 = vmatprep.subr.bf16.mxu0 0
    %484 = vmatpush1.bf16.msra.mxu0 %v465
    %485 = vmatprep.subr.bf16.mxu0 0
    %486 = vmatpush1.bf16.msra.mxu0 %v466
    %487 = vmatprep.subr.bf16.mxu0 0
    %488 = vmatpush1.bf16.msra.mxu0 %v467
    %489 = vmatprep.subr.bf16.mxu0 0
    %490 = vmatpush1.bf16.msra.mxu0 %v468
    %491 = vmatprep.subr.bf16.mxu0 0
    %492 = vmatpush1.bf16.msra.mxu0 %v469
    %493 = vmatprep.subr.bf16.mxu0 0
    %494 = vmatpush1.bf16.msra.mxu0 %v470
    %495 = vmatprep.subr.bf16.mxu0 0
    %496 = vmatpush1.bf16.msra.mxu0 0
    %497 = vmatprep.subr.bf16.mxu0 0
    %498 = vmatpush1.bf16.msra.mxu0 0
    %499 = vmatprep.subr.bf16.mxu0 0
    %500 = vmatpush1.bf16.msra.mxu0 0
    %501 = vmatprep.subr.bf16.mxu0 0
    %502 = vmatpush1.bf16.msra.mxu0 0
    %503 = vmatprep.subr.bf16.mxu0 0
    %504 = vmatpush1.bf16.msra.mxu0 0
    %505 = vmatprep.subr.bf16.mxu0 0
    %506 = vmatpush1.bf16.msra.mxu0 0
    %507 = vmatprep.subr.bf16.mxu0 0
    %508 = vmatpush1.bf16.msra.mxu0 0
    %509 = vmatprep.subr.bf16.mxu0 0
    %510 = vmatpush1.bf16.msra.mxu0 0
    %511 = vmatprep.mubr.bf16.mxu0 0
    %512 = vmatmul.mubr.bf16.gmra.mrb[0].mxu0 %v407
    %v513 = vpop.f32.mrb[0].mxu0
    %v514 = vadd.f32 %v429, %v513
    %v515 = vpop.f32.mrb[0].mxu0
    %v516 = vpop.f32.mrb[0].mxu0
    %v517 = vpop.f32.mrb[0].mxu0
    %518 = vdwg.mxu0
    %519 = vmatprep.subr.mxu0 0.0
    %520 = vmatpush1.msra.mxu0 %v514
    %521 = vmatprep.subr.mxu0 0.0
    %522 = vmatpush1.msra.mxu0 0.0
    %523 = vmatprep.subr.mxu0 0.0
    %524 = vmatpush1.msra.mxu0 0.0
    %525 = vmatprep.subr.mxu0 0.0
    %526 = vmatpush1.msra.mxu0 0.0
    %527 = vmatprep.subr.mxu0 0.0
    %528 = vmatpush1.msra.mxu0 0.0
    %529 = vmatprep.subr.mxu0 0.0
    %530 = vmatpush1.msra.mxu0 0.0
    %531 = vmatprep.subr.mxu0 0.0
    %532 = vmatpush1.msra.mxu0 0.0
    %533 = vmatprep.subr.mxu0 0.0
    %534 = vmatpush1.msra.mxu0 0.0
    %535 = vmatprep.subr.mxu0 0.0
    %536 = vmatpush1.msra.mxu0 0.0
    %537 = vmatprep.subr.mxu0 0.0
    %538 = vmatpush1.msra.mxu0 0.0
    %539 = vmatprep.subr.mxu0 0.0
    %540 = vmatpush1.msra.mxu0 0.0
    %541 = vmatprep.subr.mxu0 0.0
    %542 = vmatpush1.msra.mxu0 0.0
    %543 = vmatprep.subr.mxu0 0.0
    %544 = vmatpush1.msra.mxu0 0.0
    %545 = vmatprep.subr.mxu0 0.0
    %546 = vmatpush1.msra.mxu0 0.0
    %547 = vmatprep.subr.mxu0 0.0
    %548 = vmatpush1.msra.mxu0 0.0
    %549 = vmatprep.subr.mxu0 0.0
    %550 = vmatpush1.msra.mxu0 0.0
    %551 = vmatprep.subr.mxu0 0.0
    %552 = vmatpush1.msra.mxu0 0.0
    %553 = vmatprep.subr.mxu0 0.0
    %554 = vmatpush1.msra.mxu0 0.0
    %555 = vmatprep.subr.mxu0 0.0
    %556 = vmatpush1.msra.mxu0 0.0
    %557 = vmatprep.subr.mxu0 0.0
    %558 = vmatpush1.msra.mxu0 0.0
    %559 = vmatprep.subr.mxu0 0.0
    %560 = vmatpush1.msra.mxu0 0.0
    %561 = vmatprep.subr.mxu0 0.0
    %562 = vmatpush1.msra.mxu0 0.0
    %563 = vmatprep.subr.mxu0 0.0
    %564 = vmatpush1.msra.mxu0 0.0
    %565 = vmatprep.subr.mxu0 0.0
    %566 = vmatpush1.msra.mxu0 0.0
    %567 = vmatprep.subr.mxu0 0.0
    %568 = vmatpush1.msra.mxu0 0.0
    %569 = vmatprep.subr.mxu0 0.0
    %570 = vmatpush1.msra.mxu0 0.0
    %571 = vmatprep.subr.mxu0 0.0
    %572 = vmatpush1.msra.mxu0 0.0
    %573 = vmatprep.subr.mxu0 0.0
    %574 = vmatpush1.msra.mxu0 0.0
    %575 = vmatprep.subr.mxu0 0.0
    %576 = vmatpush1.msra.mxu0 0.0
    %577 = vmatprep.subr.mxu0 0.0
    %578 = vmatpush1.msra.mxu0 0.0
    %579 = vmatprep.subr.mxu0 0.0
    %580 = vmatpush1.msra.mxu0 0.0
    %581 = vmatprep.subr.mxu0 0.0
    %582 = vmatpush1.msra.mxu0 0.0
    %583 = vmatprep.mubr.f32.mxu0 0.0
    %584 = vmatmul.mubr.f32.gmra.mrb[0].mxu0 %v249
    %v585 = vpop.f32.mrb[0].mxu0
    %v586 = vadd.f32 0.0, %v585
    %v587 = vpop.f32.mrb[0].mxu0
    %588 = vdwg.mxu0
    %v589 = vmul.f32 %v586, 0.125
    %v590 = vlaneseq
    %v591 = vshrl.u32 %v590, 7
    %v592 = vsub.s32 0, %v591
    %v593 = vrot.slane %v589, %v592
    %v594 = vsub.f32 %v514, %v593
    %v595 = vmul.f32 %v594, %v594
    %596 = vmatprep.subr.mxu0 0.0
    %597 = vmatpush1.msra.mxu0 %v595
    %598 = vmatprep.subr.mxu0 0.0
    %599 = vmatpush1.msra.mxu0 0.0
    %600 = vmatprep.subr.mxu0 0.0
    %601 = vmatpush1.msra.mxu0 0.0
    %602 = vmatprep.subr.mxu0 0.0
    %603 = vmatpush1.msra.mxu0 0.0
    %604 = vmatprep.subr.mxu0 0.0
    %605 = vmatpush1.msra.mxu0 0.0
    %606 = vmatprep.subr.mxu0 0.0
    %607 = vmatpush1.msra.mxu0 0.0
    %608 = vmatprep.subr.mxu0 0.0
    %609 = vmatpush1.msra.mxu0 0.0
    %610 = vmatprep.subr.mxu0 0.0
    %611 = vmatpush1.msra.mxu0 0.0
    %612 = vmatprep.subr.mxu0 0.0
    %613 = vmatpush1.msra.mxu0 0.0
    %614 = vmatprep.subr.mxu0 0.0
    %615 = vmatpush1.msra.mxu0 0.0
    %616 = vmatprep.subr.mxu0 0.0
    %617 = vmatpush1.msra.mxu0 0.0
    %618 = vmatprep.subr.mxu0 0.0
    %619 = vmatpush1.msra.mxu0 0.0
    %620 = vmatprep.subr.mxu0 0.0
    %621 = vmatpush1.msra.mxu0 0.0
    %622 = vmatprep.subr.mxu0 0.0
    %623 = vmatpush1.msra.mxu0 0.0
    %624 = vmatprep.subr.mxu0 0.0
    %625 = vmatpush1.msra.mxu0 0.0
    %626 = vmatprep.subr.mxu0 0.0
    %627 = vmatpush1.msra.mxu0 0.0
    %628 = vmatprep.subr.mxu0 0.0
    %629 = vmatpush1.msra.mxu0 0.0
    %630 = vmatprep.subr.mxu0 0.0
    %631 = vmatpush1.msra.mxu0 0.0
    %632 = vmatprep.subr.mxu0 0.0
    %633 = vmatpush1.msra.mxu0 0.0
    %634 = vmatprep.subr.mxu0 0.0
    %635 = vmatpush1.msra.mxu0 0.0
    %636 = vmatprep.subr.mxu0 0.0
    %637 = vmatpush1.msra.mxu0 0.0
    %638 = vmatprep.subr.mxu0 0.0
    %639 = vmatpush1.msra.mxu0 0.0
    %640 = vmatprep.subr.mxu0 0.0
    %641 = vmatpush1.msra.mxu0 0.0
    %642 = vmatprep.subr.mxu0 0.0
    %643 = vmatpush1.msra.mxu0 0.0
    %644 = vmatprep.subr.mxu0 0.0
    %645 = vmatpush1.msra.mxu0 0.0
    %646 = vmatprep.subr.mxu0 0.0
    %647 = vmatpush1.msra.mxu0 0.0
    %648 = vmatprep.subr.mxu0 0.0
    %649 = vmatpush1.msra.mxu0 0.0
    %650 = vmatprep.subr.mxu0 0.0
    %651 = vmatpush1.msra.mxu0 0.0
    %652 = vmatprep.subr.mxu0 0.0
    %653 = vmatpush1.msra.mxu0 0.0
    %654 = vmatprep.subr.mxu0 0.0
    %655 = vmatpush1.msra.mxu0 0.0
    %656 = vmatprep.subr.mxu0 0.0
    %657 = vmatpush1.msra.mxu0 0.0
    %658 = vmatprep.subr.mxu0 0.0
    %659 = vmatpush1.msra.mxu0 0.0
    %660 = vmatprep.mubr.f32.mxu0 0.0
    %661 = vmatmul.mubr.f32.gmra.mrb[0].mxu0 %v249
    %v662 = vpop.f32.mrb[0].mxu0
    %v663 = vadd.f32 0.0, %v662
    %v664 = vpop.f32.mrb[0].mxu0
    %665 = vdwg.mxu0
    %v666 = vmul.f32 %v663, 0.125
    %v667 = vadd.f32 %v666, 1e-05
    %v668 = vrsqrt.pop %v667
    %v669 = vlaneseq
    %v670 = vshrl.u32 %v669, 7
    %v671 = vsub.s32 0, %v670
    %v672 = vrot.slane %v668, %v671
    %v673 = vmul.f32 %v594, %v672
    %v674 = vmax.f32 %v673, 0.0
    %v675 = vpack.c.bf16 %v674, %v674
    %v676 = vld [vmem:[#allocation7] sm:$0xf]
    %v677 = vld [vmem:[#allocation7 + $0x4] sm:$0xf]
    %v678 = vld [vmem:[#allocation7 + $0x8] sm:$0xf]
    %v679 = vld [vmem:[#allocation7 + $0xc] sm:$0xf]
    %v680 = vld [vmem:[#allocation7 + $0x10] sm:$0xf]
    %v681 = vld [vmem:[#allocation7 + $0x14] sm:$0xf]
    %v682 = vld [vmem:[#allocation7 + $0x18] sm:$0xf]
    %v683 = vld [vmem:[#allocation7 + $0x1c] sm:$0xf]
    %v684 = vld [vmem:[#allocation7 + $0x20] sm:$0xf]
    %v685 = vld [vmem:[#allocation7 + $0x24] sm:$0xf]
    %v686 = vld [vmem:[#allocation7 + $0x28] sm:$0xf]
    %v687 = vld [vmem:[#allocation7 + $0x2c] sm:$0xf]
    %v688 = vld [vmem:[#allocation7 + $0x30] sm:$0xf]
    %v689 = vld [vmem:[#allocation7 + $0x34] sm:$0xf]
    %v690 = vld [vmem:[#allocation7 + $0x38] sm:$0xf]
    %v691 = vld [vmem:[#allocation7 + $0x3c] sm:$0xf]
    %v692 = vld [vmem:[%s7] sm:$0x1]
    %v694 = vlaneseq
    %v695 = vshrl.u32 %v694, 7
    %v696 = vsub.s32 0, %v695
    %v697 = vrot.slane %v692, %v696
    %v715 = vunpack.c.l.b16 %v676
    %v716 = vunpack.c.l.b16 %v677
    %v717 = vunpack.c.l.b16 %v678
    %v718 = vunpack.c.l.b16 %v679
    %v719 = vunpack.c.l.b16 %v680
    %v720 = vunpack.c.l.b16 %v681
    %v721 = vunpack.c.l.b16 %v682
    %v722 = vunpack.c.l.b16 %v683
    %v723 = vunpack.c.l.b16 %v684
    %v724 = vunpack.c.l.b16 %v685
    %v725 = vunpack.c.l.b16 %v686
    %v726 = vunpack.c.l.b16 %v687
    %v727 = vunpack.c.l.b16 %v688
    %v728 = vunpack.c.l.b16 %v689
    %v729 = vunpack.c.l.b16 %v690
    %v730 = vunpack.c.l.b16 %v691
    %v731 = vpack.c.b16 %v716, %v715
    %v732 = vpack.c.b16 %v718, %v717
    %v733 = vpack.c.b16 %v720, %v719
    %v734 = vpack.c.b16 %v722, %v721
    %v735 = vpack.c.b16 %v724, %v723
    %v736 = vpack.c.b16 %v726, %v725
    %v737 = vpack.c.b16 %v728, %v727
    %v738 = vpack.c.b16 %v730, %v729
    %747 = vmatprep.subr.bf16.mxu0 0
    %748 = vmatpush1.bf16.msra.mxu0 %v731
    %749 = vmatprep.subr.bf16.mxu0 0
    %750 = vmatpush1.bf16.msra.mxu0 %v732
    %751 = vmatprep.subr.bf16.mxu0 0
    %752 = vmatpush1.bf16.msra.mxu0 %v733
    %753 = vmatprep.subr.bf16.mxu0 0
    %754 = vmatpush1.bf16.msra.mxu0 %v734
    %755 = vmatprep.subr.bf16.mxu0 0
    %756 = vmatpush1.bf16.msra.mxu0 %v735
    %757 = vmatprep.subr.bf16.mxu0 0
    %758 = vmatpush1.bf16.msra.mxu0 %v736
    %759 = vmatprep.subr.bf16.mxu0 0
    %760 = vmatpush1.bf16.msra.mxu0 %v737
    %761 = vmatprep.subr.bf16.mxu0 0
    %762 = vmatpush1.bf16.msra.mxu0 %v738
    %763 = vmatprep.subr.bf16.mxu0 0
    %764 = vmatpush1.bf16.msra.mxu0 0
    %765 = vmatprep.subr.bf16.mxu0 0
    %766 = vmatpush1.bf16.msra.mxu0 0
    %767 = vmatprep.subr.bf16.mxu0 0
    %768 = vmatpush1.bf16.msra.mxu0 0
    %769 = vmatprep.subr.bf16.mxu0 0
    %770 = vmatpush1.bf16.msra.mxu0 0
    %771 = vmatprep.subr.bf16.mxu0 0
    %772 = vmatpush1.bf16.msra.mxu0 0
    %773 = vmatprep.subr.bf16.mxu0 0
    %774 = vmatpush1.bf16.msra.mxu0 0
    %775 = vmatprep.subr.bf16.mxu0 0
    %776 = vmatpush1.bf16.msra.mxu0 0
    %777 = vmatprep.subr.bf16.mxu0 0
    %778 = vmatpush1.bf16.msra.mxu0 0
    %779 = vmatprep.mubr.bf16.mxu0 0
    %780 = vmatmul.mubr.bf16.gmra.mrb[0].mxu0 %v675
    %v781 = vpop.f32.mrb[0].mxu0
    %v782 = vadd.f32 %v697, %v781
    %v783 = vpop.f32.mrb[0].mxu0
    %v784 = vpop.f32.mrb[0].mxu0
    %v785 = vpop.f32.mrb[0].mxu0
    %786 = vdwg.mxu0
    %787 = vmatprep.subr.mxu0 0.0
    %788 = vmatpush1.msra.mxu0 %v782
    %789 = vmatprep.subr.mxu0 0.0
    %790 = vmatpush1.msra.mxu0 0.0
    %791 = vmatprep.subr.mxu0 0.0
    %792 = vmatpush1.msra.mxu0 0.0
    %793 = vmatprep.subr.mxu0 0.0
    %794 = vmatpush1.msra.mxu0 0.0
    %795 = vmatprep.subr.mxu0 0.0
    %796 = vmatpush1.msra.mxu0 0.0
    %797 = vmatprep.subr.mxu0 0.0
    %798 = vmatpush1.msra.mxu0 0.0
    %799 = vmatprep.subr.mxu0 0.0
    %800 = vmatpush1.msra.mxu0 0.0
    %801 = vmatprep.subr.mxu0 0.0
    %802 = vmatpush1.msra.mxu0 0.0
    %803 = vmatprep.subr.mxu0 0.0
    %804 = vmatpush1.msra.mxu0 0.0
    %805 = vmatprep.subr.mxu0 0.0
    %806 = vmatpush1.msra.mxu0 0.0
    %807 = vmatprep.subr.mxu0 0.0
    %808 = vmatpush1.msra.mxu0 0.0
    %809 = vmatprep.subr.mxu0 0.0
    %810 = vmatpush1.msra.mxu0 0.0
    %811 = vmatprep.subr.mxu0 0.0
    %812 = vmatpush1.msra.mxu0 0.0
    %813 = vmatprep.subr.mxu0 0.0
    %814 = vmatpush1.msra.mxu0 0.0
    %815 = vmatprep.subr.mxu0 0.0
    %816 = vmatpush1.msra.mxu0 0.0
    %817 = vmatprep.subr.mxu0 0.0
    %818 = vmatpush1.msra.mxu0 0.0
    %819 = vmatprep.subr.mxu0 0.0
    %820 = vmatpush1.msra.mxu0 0.0
    %821 = vmatprep.subr.mxu0 0.0
    %822 = vmatpush1.msra.mxu0 0.0
    %823 = vmatprep.subr.mxu0 0.0
    %824 = vmatpush1.msra.mxu0 0.0
    %825 = vmatprep.subr.mxu0 0.0
    %826 = vmatpush1.msra.mxu0 0.0
    %827 = vmatprep.subr.mxu0 0.0
    %828 = vmatpush1.msra.mxu0 0.0
    %829 = vmatprep.subr.mxu0 0.0
    %830 = vmatpush1.msra.mxu0 0.0
    %831 = vmatprep.subr.mxu0 0.0
    %832 = vmatpush1.msra.mxu0 0.0
    %833 = vmatprep.subr.mxu0 0.0
    %834 = vmatpush1.msra.mxu0 0.0
    %835 = vmatprep.subr.mxu0 0.0
    %836 = vmatpush1.msra.mxu0 0.0
    %837 = vmatprep.subr.mxu0 0.0
    %838 = vmatpush1.msra.mxu0 0.0
    %839 = vmatprep.subr.mxu0 0.0
    %840 = vmatpush1.msra.mxu0 0.0
    %841 = vmatprep.subr.mxu0 0.0
    %842 = vmatpush1.msra.mxu0 0.0
    %843 = vmatprep.subr.mxu0 0.0
    %844 = vmatpush1.msra.mxu0 0.0
    %845 = vmatprep.subr.mxu0 0.0
    %846 = vmatpush1.msra.mxu0 0.0
    %847 = vmatprep.subr.mxu0 0.0
    %848 = vmatpush1.msra.mxu0 0.0
    %849 = vmatprep.subr.mxu0 0.0
    %850 = vmatpush1.msra.mxu0 0.0
    %851 = vmatprep.mubr.f32.mxu0 0.0
    %852 = vmatmul.mubr.f32.gmra.mrb[0].mxu0 %v249
    %v853 = vpop.f32.mrb[0].mxu0
    %v854 = vadd.f32 0.0, %v853
    %v855 = vpop.f32.mrb[0].mxu0
    %856 = vdwg.mxu0
    %v857 = vmul.f32 %v854, 0.125
    %v858 = vlaneseq
    %v859 = vshrl.u32 %v858, 7
    %v860 = vsub.s32 0, %v859
    %v861 = vrot.slane %v857, %v860
    %v862 = vsub.f32 %v782, %v861
    %v863 = vmul.f32 %v862, %v862
    %864 = vmatprep.subr.mxu0 0.0
    %865 = vmatpush1.msra.mxu0 %v863
    %866 = vmatprep.subr.mxu0 0.0
    %867 = vmatpush1.msra.mxu0 0.0
    %868 = vmatprep.subr.mxu0 0.0
    %869 = vmatpush1.msra.mxu0 0.0
    %870 = vmatprep.subr.mxu0 0.0
    %871 = vmatpush1.msra.mxu0 0.0
    %872 = vmatprep.subr.mxu0 0.0
    %873 = vmatpush1.msra.mxu0 0.0
    %874 = vmatprep.subr.mxu0 0.0
    %875 = vmatpush1.msra.mxu0 0.0
    %876 = vmatprep.subr.mxu0 0.0
    %877 = vmatpush1.msra.mxu0 0.0
    %878 = vmatprep.subr.mxu0 0.0
    %879 = vmatpush1.msra.mxu0 0.0
    %880 = vmatprep.subr.mxu0 0.0
    %881 = vmatpush1.msra.mxu0 0.0
    %882 = vmatprep.subr.mxu0 0.0
    %883 = vmatpush1.msra.mxu0 0.0
    %884 = vmatprep.subr.mxu0 0.0
    %885 = vmatpush1.msra.mxu0 0.0
    %886 = vmatprep.subr.mxu0 0.0
    %887 = vmatpush1.msra.mxu0 0.0
    %888 = vmatprep.subr.mxu0 0.0
    %889 = vmatpush1.msra.mxu0 0.0
    %890 = vmatprep.subr.mxu0 0.0
    %891 = vmatpush1.msra.mxu0 0.0
    %892 = vmatprep.subr.mxu0 0.0
    %893 = vmatpush1.msra.mxu0 0.0
    %894 = vmatprep.subr.mxu0 0.0
    %895 = vmatpush1.msra.mxu0 0.0
    %896 = vmatprep.subr.mxu0 0.0
    %897 = vmatpush1.msra.mxu0 0.0
    %898 = vmatprep.subr.mxu0 0.0
    %899 = vmatpush1.msra.mxu0 0.0
    %900 = vmatprep.subr.mxu0 0.0
    %901 = vmatpush1.msra.mxu0 0.0
    %902 = vmatprep.subr.mxu0 0.0
    %903 = vmatpush1.msra.mxu0 0.0
    %904 = vmatprep.subr.mxu0 0.0
    %905 = vmatpush1.msra.mxu0 0.0
    %906 = vmatprep.subr.mxu0 0.0
    %907 = vmatpush1.msra.mxu0 0.0
    %908 = vmatprep.subr.mxu0 0.0
    %909 = vmatpush1.msra.mxu0 0.0
    %910 = vmatprep.subr.mxu0 0.0
    %911 = vmatpush1.msra.mxu0 0.0
    %912 = vmatprep.subr.mxu0 0.0
    %913 = vmatpush1.msra.mxu0 0.0
    %914 = vmatprep.subr.mxu0 0.0
    %915 = vmatpush1.msra.mxu0 0.0
    %916 = vmatprep.subr.mxu0 0.0
    %917 = vmatpush1.msra.mxu0 0.0
    %918 = vmatprep.subr.mxu0 0.0
    %919 = vmatpush1.msra.mxu0 0.0
    %920 = vmatprep.subr.mxu0 0.0
    %921 = vmatpush1.msra.mxu0 0.0
    %922 = vmatprep.subr.mxu0 0.0
    %923 = vmatpush1.msra.mxu0 0.0
    %924 = vmatprep.subr.mxu0 0.0
    %925 = vmatpush1.msra.mxu0 0.0
    %926 = vmatprep.subr.mxu0 0.0
    %927 = vmatpush1.msra.mxu0 0.0
    %928 = vmatprep.mubr.f32.mxu0 0.0
    %929 = vmatmul.mubr.f32.gmra.mrb[0].mxu0 %v249
    %v930 = vpop.f32.mrb[0].mxu0
    %v931 = vadd.f32 0.0, %v930
    %v932 = vpop.f32.mrb[0].mxu0
    %933 = vdwg.mxu0
    %v934 = vmul.f32 %v931, 0.125
    %v935 = vadd.f32 %v934, 1e-05
    %v936 = vrsqrt.pop %v935
    %v937 = vlaneseq
    %v938 = vshrl.u32 %v937, 7
    %v939 = vsub.s32 0, %v938
    %v940 = vrot.slane %v936, %v939
    %v941 = vmul.f32 %v862, %v940
    %v942 = vmax.f32 %v941, 0.0
    %943 = vst [vmem:[#allocation13] sm:$0xff] %v942
    %v944 = vpack.c.bf16 %v942, %v942
    %v945 = vld [vmem:[#allocation8] sm:$0xf]
    %v946 = vld [vmem:[#allocation8 + $0x4] sm:$0xf]
    %v947 = vld [vmem:[#allocation8 + $0x8] sm:$0xf]
    %v948 = vld [vmem:[#allocation8 + $0xc] sm:$0xf]
    %v949 = vld [vmem:[#allocation8 + $0x10] sm:$0xf]
    %v950 = vld [vmem:[#allocation8 + $0x14] sm:$0xf]
    %v951 = vld [vmem:[#allocation8 + $0x18] sm:$0xf]
    %v952 = vld [vmem:[#allocation8 + $0x1c] sm:$0xf]
    %v953 = vld [vmem:[#allocation8 + $0x20] sm:$0xf]
    %v954 = vld [vmem:[#allocation8 + $0x24] sm:$0xf]
    %v955 = vld [vmem:[#allocation8 + $0x28] sm:$0xf]
    %v956 = vld [vmem:[#allocation8 + $0x2c] sm:$0xf]
    %v957 = vld [vmem:[#allocation8 + $0x30] sm:$0xf]
    %v958 = vld [vmem:[#allocation8 + $0x34] sm:$0xf]
    %v959 = vld [vmem:[#allocation8 + $0x38] sm:$0xf]
    %v960 = vld [vmem:[#allocation8 + $0x3c] sm:$0xf]
    %v961 = vld [vmem:[%s9] sm:$0x1]
    %v963 = vlaneseq
    %v964 = vshrl.u32 %v963, 7
    %v965 = vsub.s32 0, %v964
    %v966 = vrot.slane %v961, %v965
    %v984 = vunpack.c.l.b16 %v945
    %v985 = vunpack.c.l.b16 %v946
    %v986 = vunpack.c.l.b16 %v947
    %v987 = vunpack.c.l.b16 %v948
    %v988 = vunpack.c.l.b16 %v949
    %v989 = vunpack.c.l.b16 %v950
    %v990 = vunpack.c.l.b16 %v951
    %v991 = vunpack.c.l.b16 %v952
    %v992 = vunpack.c.l.b16 %v953
    %v993 = vunpack.c.l.b16 %v954
    %v994 = vunpack.c.l.b16 %v955
    %v995 = vunpack.c.l.b16 %v956
    %v996 = vunpack.c.l.b16 %v957
    %v997 = vunpack.c.l.b16 %v958
    %v998 = vunpack.c.l.b16 %v959
    %v999 = vunpack.c.l.b16 %v960
    %v1000 = vpack.c.b16 %v985, %v984
    %v1001 = vpack.c.b16 %v987, %v986
    %v1002 = vpack.c.b16 %v989, %v988
    %v1003 = vpack.c.b16 %v991, %v990
    %v1004 = vpack.c.b16 %v993, %v992
    %v1005 = vpack.c.b16 %v995, %v994
    %v1006 = vpack.c.b16 %v997, %v996
    %v1007 = vpack.c.b16 %v999, %v998
    %1016 = vmatprep.subr.bf16.mxu0 0
    %1017 = vmatpush1.bf16.msra.mxu0 %v1000
    %1018 = vmatprep.subr.bf16.mxu0 0
    %1019 = vmatpush1.bf16.msra.mxu0 %v1001
    %1020 = vmatprep.subr.bf16.mxu0 0
    %1021 = vmatpush1.bf16.msra.mxu0 %v1002
    %1022 = vmatprep.subr.bf16.mxu0 0
    %1023 = vmatpush1.bf16.msra.mxu0 %v1003
    %1024 = vmatprep.subr.bf16.mxu0 0
    %1025 = vmatpush1.bf16.msra.mxu0 %v1004
    %1026 = vmatprep.subr.bf16.mxu0 0
    %1027 = vmatpush1.bf16.msra.mxu0 %v1005
    %1028 = vmatprep.subr.bf16.mxu0 0
    %1029 = vmatpush1.bf16.msra.mxu0 %v1006
    %1030 = vmatprep.subr.bf16.mxu0 0
    %1031 = vmatpush1.bf16.msra.mxu0 %v1007
    %1032 = vmatprep.subr.bf16.mxu0 0
    %1033 = vmatpush1.bf16.msra.mxu0 0
    %1034 = vmatprep.subr.bf16.mxu0 0
    %1035 = vmatpush1.bf16.msra.mxu0 0
    %1036 = vmatprep.subr.bf16.mxu0 0
    %1037 = vmatpush1.bf16.msra.mxu0 0
    %1038 = vmatprep.subr.bf16.mxu0 0
    %1039 = vmatpush1.bf16.msra.mxu0 0
    %1040 = vmatprep.subr.bf16.mxu0 0
    %1041 = vmatpush1.bf16.msra.mxu0 0
    %1042 = vmatprep.subr.bf16.mxu0 0
    %1043 = vmatpush1.bf16.msra.mxu0 0
    %1044 = vmatprep.subr.bf16.mxu0 0
    %1045 = vmatpush1.bf16.msra.mxu0 0
    %1046 = vmatprep.subr.bf16.mxu0 0
    %1047 = vmatpush1.bf16.msra.mxu0 0
    %1048 = vmatprep.mubr.bf16.mxu0 0
    %1049 = vmatmul.mubr.bf16.gmra.mrb[0].mxu0 %v944
    %v1050 = vpop.f32.mrb[0].mxu0
    %v1051 = vadd.f32 %v966, %v1050
    %v1052 = vpop.f32.mrb[0].mxu0
    %v1053 = vpop.f32.mrb[0].mxu0
    %v1054 = vpop.f32.mrb[0].mxu0
    %1055 = vdwg.mxu0
    %1056 = vmatprep.subr.mxu0 0.0
    %1057 = vmatpush1.msra.mxu0 %v1051
    %1058 = vmatprep.subr.mxu0 0.0
    %1059 = vmatpush1.msra.mxu0 0.0
    %1060 = vmatprep.subr.mxu0 0.0
    %1061 = vmatpush1.msra.mxu0 0.0
    %1062 = vmatprep.subr.mxu0 0.0
    %1063 = vmatpush1.msra.mxu0 0.0
    %1064 = vmatprep.subr.mxu0 0.0
    %1065 = vmatpush1.msra.mxu0 0.0
    %1066 = vmatprep.subr.mxu0 0.0
    %1067 = vmatpush1.msra.mxu0 0.0
    %1068 = vmatprep.subr.mxu0 0.0
    %1069 = vmatpush1.msra.mxu0 0.0
    %1070 = vmatprep.subr.mxu0 0.0
    %1071 = vmatpush1.msra.mxu0 0.0
    %1072 = vmatprep.subr.mxu0 0.0
    %1073 = vmatpush1.msra.mxu0 0.0
    %1074 = vmatprep.subr.mxu0 0.0
    %1075 = vmatpush1.msra.mxu0 0.0
    %1076 = vmatprep.subr.mxu0 0.0
    %1077 = vmatpush1.msra.mxu0 0.0
    %1078 = vmatprep.subr.mxu0 0.0
    %1079 = vmatpush1.msra.mxu0 0.0
    %1080 = vmatprep.subr.mxu0 0.0
    %1081 = vmatpush1.msra.mxu0 0.0
    %1082 = vmatprep.subr.mxu0 0.0
    %1083 = vmatpush1.msra.mxu0 0.0
    %1084 = vmatprep.subr.mxu0 0.0
    %1085 = vmatpush1.msra.mxu0 0.0
    %1086 = vmatprep.subr.mxu0 0.0
    %1087 = vmatpush1.msra.mxu0 0.0
    %1088 = vmatprep.subr.mxu0 0.0
    %1089 = vmatpush1.msra.mxu0 0.0
    %1090 = vmatprep.subr.mxu0 0.0
    %1091 = vmatpush1.msra.mxu0 0.0
    %1092 = vmatprep.subr.mxu0 0.0
    %1093 = vmatpush1.msra.mxu0 0.0
    %1094 = vmatprep.subr.mxu0 0.0
    %1095 = vmatpush1.msra.mxu0 0.0
    %1096 = vmatprep.subr.mxu0 0.0
    %1097 = vmatpush1.msra.mxu0 0.0
    %1098 = vmatprep.subr.mxu0 0.0
    %1099 = vmatpush1.msra.mxu0 0.0
    %1100 = vmatprep.subr.mxu0 0.0
    %1101 = vmatpush1.msra.mxu0 0.0
    %1102 = vmatprep.subr.mxu0 0.0
    %1103 = vmatpush1.msra.mxu0 0.0
    %1104 = vmatprep.subr.mxu0 0.0
    %1105 = vmatpush1.msra.mxu0 0.0
    %1106 = vmatprep.subr.mxu0 0.0
    %1107 = vmatpush1.msra.mxu0 0.0
    %1108 = vmatprep.subr.mxu0 0.0
    %1109 = vmatpush1.msra.mxu0 0.0
    %1110 = vmatprep.subr.mxu0 0.0
    %1111 = vmatpush1.msra.mxu0 0.0
    %1112 = vmatprep.subr.mxu0 0.0
    %1113 = vmatpush1.msra.mxu0 0.0
    %1114 = vmatprep.subr.mxu0 0.0
    %1115 = vmatpush1.msra.mxu0 0.0
    %1116 = vmatprep.subr.mxu0 0.0
    %1117 = vmatpush1.msra.mxu0 0.0
    %1118 = vmatprep.subr.mxu0 0.0
    %1119 = vmatpush1.msra.mxu0 0.0
    %1120 = vmatprep.mubr.f32.mxu0 0.0
    %1121 = vmatmul.mubr.f32.gmra.mrb[0].mxu0 %v249
    %v1122 = vpop.f32.mrb[0].mxu0
    %v1123 = vadd.f32 0.0, %v1122
    %v1124 = vpop.f32.mrb[0].mxu0
    %1125 = vdwg.mxu0
    %v1126 = vmul.f32 %v1123, 0.125
    %v1127 = vlaneseq
    %v1128 = vshrl.u32 %v1127, 7
    %v1129 = vsub.s32 0, %v1128
    %v1130 = vrot.slane %v1126, %v1129
    %v1131 = vsub.f32 %v1051, %v1130
    %v1132 = vmul.f32 %v1131, %v1131
    %1133 = vmatprep.subr.mxu0 0.0
    %1134 = vmatpush1.msra.mxu0 %v1132
    %1135 = vmatprep.subr.mxu0 0.0
    %1136 = vmatpush1.msra.mxu0 0.0
    %1137 = vmatprep.subr.mxu0 0.0
    %1138 = vmatpush1.msra.mxu0 0.0
    %1139 = vmatprep.subr.mxu0 0.0
    %1140 = vmatpush1.msra.mxu0 0.0
    %1141 = vmatprep.subr.mxu0 0.0
    %1142 = vmatpush1.msra.mxu0 0.0
    %1143 = vmatprep.subr.mxu0 0.0
    %1144 = vmatpush1.msra.mxu0 0.0
    %1145 = vmatprep.subr.mxu0 0.0
    %1146 = vmatpush1.msra.mxu0 0.0
    %1147 = vmatprep.subr.mxu0 0.0
    %1148 = vmatpush1.msra.mxu0 0.0
    %1149 = vmatprep.subr.mxu0 0.0
    %1150 = vmatpush1.msra.mxu0 0.0
    %1151 = vmatprep.subr.mxu0 0.0
    %1152 = vmatpush1.msra.mxu0 0.0
    %1153 = vmatprep.subr.mxu0 0.0
    %1154 = vmatpush1.msra.mxu0 0.0
    %1155 = vmatprep.subr.mxu0 0.0
    %1156 = vmatpush1.msra.mxu0 0.0
    %1157 = vmatprep.subr.mxu0 0.0
    %1158 = vmatpush1.msra.mxu0 0.0
    %1159 = vmatprep.subr.mxu0 0.0
    %1160 = vmatpush1.msra.mxu0 0.0
    %1161 = vmatprep.subr.mxu0 0.0
    %1162 = vmatpush1.msra.mxu0 0.0
    %1163 = vmatprep.subr.mxu0 0.0
    %1164 = vmatpush1.msra.mxu0 0.0
    %1165 = vmatprep.subr.mxu0 0.0
    %1166 = vmatpush1.msra.mxu0 0.0
    %1167 = vmatprep.subr.mxu0 0.0
    %1168 = vmatpush1.msra.mxu0 0.0
    %1169 = vmatprep.subr.mxu0 0.0
    %1170 = vmatpush1.msra.mxu0 0.0
    %1171 = vmatprep.subr.mxu0 0.0
    %1172 = vmatpush1.msra.mxu0 0.0
    %1173 = vmatprep.subr.mxu0 0.0
    %1174 = vmatpush1.msra.mxu0 0.0
    %1175 = vmatprep.subr.mxu0 0.0
    %1176 = vmatpush1.msra.mxu0 0.0
    %1177 = vmatprep.subr.mxu0 0.0
    %1178 = vmatpush1.msra.mxu0 0.0
    %1179 = vmatprep.subr.mxu0 0.0
    %1180 = vmatpush1.msra.mxu0 0.0
    %1181 = vmatprep.subr.mxu0 0.0
    %1182 = vmatpush1.msra.mxu0 0.0
    %1183 = vmatprep.subr.mxu0 0.0
    %1184 = vmatpush1.msra.mxu0 0.0
    %1185 = vmatprep.subr.mxu0 0.0
    %1186 = vmatpush1.msra.mxu0 0.0
    %1187 = vmatprep.subr.mxu0 0.0
    %1188 = vmatpush1.msra.mxu0 0.0
    %1189 = vmatprep.subr.mxu0 0.0
    %1190 = vmatpush1.msra.mxu0 0.0
    %1191 = vmatprep.subr.mxu0 0.0
    %1192 = vmatpush1.msra.mxu0 0.0
    %1193 = vmatprep.subr.mxu0 0.0
    %1194 = vmatpush1.msra.mxu0 0.0
    %1195 = vmatprep.subr.mxu0 0.0
    %1196 = vmatpush1.msra.mxu0 0.0
    %1197 = vmatprep.mubr.f32.mxu0 0.0
    %1198 = vmatmul.mubr.f32.gmra.mrb[0].mxu0 %v249
    %v1199 = vpop.f32.mrb[0].mxu0
    %v1200 = vadd.f32 0.0, %v1199
    %v1201 = vpop.f32.mrb[0].mxu0
    %1202 = vdwg.mxu0
    %v1203 = vmul.f32 %v1200, 0.125
    %v1204 = vadd.f32 %v1203, 1e-05
    %v1205 = vrsqrt.pop %v1204
    %v1206 = vlaneseq
    %v1207 = vshrl.u32 %v1206, 7
    %v1208 = vsub.s32 0, %v1207
    %v1209 = vrot.slane %v1205, %v1208
    %v1210 = vmul.f32 %v1131, %v1209
    %v1211 = vmax.f32 %v1210, 0.0
    %v1212 = vpack.c.bf16 %v1211, %v1211
    %v1213 = vld [vmem:[#allocation10] sm:$0xf]
    %v1214 = vld [vmem:[#allocation10 + $0x4] sm:$0xf]
    %v1215 = vld [vmem:[#allocation10 + $0x8] sm:$0xf]
    %v1216 = vld [vmem:[#allocation10 + $0xc] sm:$0xf]
    %v1217 = vld [vmem:[#allocation10 + $0x10] sm:$0xf]
    %v1218 = vld [vmem:[#allocation10 + $0x14] sm:$0xf]
    %v1219 = vld [vmem:[#allocation10 + $0x18] sm:$0xf]
    %v1220 = vld [vmem:[#allocation10 + $0x1c] sm:$0xf]
    %v1221 = vld [vmem:[#allocation10 + $0x20] sm:$0xf]
    %v1222 = vld [vmem:[#allocation10 + $0x24] sm:$0xf]
    %v1223 = vld [vmem:[#allocation10 + $0x28] sm:$0xf]
    %v1224 = vld [vmem:[#allocation10 + $0x2c] sm:$0xf]
    %v1225 = vld [vmem:[#allocation10 + $0x30] sm:$0xf]
    %v1226 = vld [vmem:[#allocation10 + $0x34] sm:$0xf]
    %v1227 = vld [vmem:[#allocation10 + $0x38] sm:$0xf]
    %v1228 = vld [vmem:[#allocation10 + $0x3c] sm:$0xf]
    %v1229 = vld [vmem:[%s11] sm:$0x1]
    %v1231 = vlaneseq
    %v1232 = vshrl.u32 %v1231, 7
    %v1233 = vsub.s32 0, %v1232
    %v1234 = vrot.slane %v1229, %v1233
    %v1252 = vunpack.c.l.b16 %v1213
    %v1253 = vunpack.c.l.b16 %v1214
    %v1254 = vunpack.c.l.b16 %v1215
    %v1255 = vunpack.c.l.b16 %v1216
    %v1256 = vunpack.c.l.b16 %v1217
    %v1257 = vunpack.c.l.b16 %v1218
    %v1258 = vunpack.c.l.b16 %v1219
    %v1259 = vunpack.c.l.b16 %v1220
    %v1260 = vunpack.c.l.b16 %v1221
    %v1261 = vunpack.c.l.b16 %v1222
    %v1262 = vunpack.c.l.b16 %v1223
    %v1263 = vunpack.c.l.b16 %v1224
    %v1264 = vunpack.c.l.b16 %v1225
    %v1265 = vunpack.c.l.b16 %v1226
    %v1266 = vunpack.c.l.b16 %v1227
    %v1267 = vunpack.c.l.b16 %v1228
    %v1268 = vpack.c.b16 %v1253, %v1252
    %v1269 = vpack.c.b16 %v1255, %v1254
    %v1270 = vpack.c.b16 %v1257, %v1256
    %v1271 = vpack.c.b16 %v1259, %v1258
    %v1272 = vpack.c.b16 %v1261, %v1260
    %v1273 = vpack.c.b16 %v1263, %v1262
    %v1274 = vpack.c.b16 %v1265, %v1264
    %v1275 = vpack.c.b16 %v1267, %v1266
    %1284 = vmatprep.subr.bf16.mxu0 0
    %1285 = vmatpush1.bf16.msra.mxu0 %v1268
    %1286 = vmatprep.subr.bf16.mxu0 0
    %1287 = vmatpush1.bf16.msra.mxu0 %v1269
    %1288 = vmatprep.subr.bf16.mxu0 0
    %1289 = vmatpush1.bf16.msra.mxu0 %v1270
    %1290 = vmatprep.subr.bf16.mxu0 0
    %1291 = vmatpush1.bf16.msra.mxu0 %v1271
    %1292 = vmatprep.subr.bf16.mxu0 0
    %1293 = vmatpush1.bf16.msra.mxu0 %v1272
    %1294 = vmatprep.subr.bf16.mxu0 0
    %1295 = vmatpush1.bf16.msra.mxu0 %v1273
    %1296 = vmatprep.subr.bf16.mxu0 0
    %1297 = vmatpush1.bf16.msra.mxu0 %v1274
    %1298 = vmatprep.subr.bf16.mxu0 0
    %1299 = vmatpush1.bf16.msra.mxu0 %v1275
    %1300 = vmatprep.subr.bf16.mxu0 0
    %1301 = vmatpush1.bf16.msra.mxu0 0
    %1302 = vmatprep.subr.bf16.mxu0 0
    %1303 = vmatpush1.bf16.msra.mxu0 0
    %1304 = vmatprep.subr.bf16.mxu0 0
    %1305 = vmatpush1.bf16.msra.mxu0 0
    %1306 = vmatprep.subr.bf16.mxu0 0
    %1307 = vmatpush1.bf16.msra.mxu0 0
    %1308 = vmatprep.subr.bf16.mxu0 0
    %1309 = vmatpush1.bf16.msra.mxu0 0
    %1310 = vmatprep.subr.bf16.mxu0 0
    %1311 = vmatpush1.bf16.msra.mxu0 0
    %1312 = vmatprep.subr.bf16.mxu0 0
    %1313 = vmatpush1.bf16.msra.mxu0 0
    %1314 = vmatprep.subr.bf16.mxu0 0
    %1315 = vmatpush1.bf16.msra.mxu0 0
    %1316 = vmatprep.mubr.bf16.mxu0 0
    %1317 = vmatmul.mubr.bf16.gmra.mrb[0].mxu0 %v1212
    %v1318 = vpop.f32.mrb[0].mxu0
    %v1319 = vadd.f32 %v1234, %v1318
    %v1320 = vpop.f32.mrb[0].mxu0
    %v1321 = vpop.f32.mrb[0].mxu0
    %v1322 = vpop.f32.mrb[0].mxu0
    %1323 = vdwg.mxu0
    %1324 = vmatprep.subr.mxu0 0.0
    %1325 = vmatpush1.msra.mxu0 %v1319
    %1326 = vmatprep.subr.mxu0 0.0
    %1327 = vmatpush1.msra.mxu0 0.0
    %1328 = vmatprep.subr.mxu0 0.0
    %1329 = vmatpush1.msra.mxu0 0.0
    %1330 = vmatprep.subr.mxu0 0.0
    %1331 = vmatpush1.msra.mxu0 0.0
    %1332 = vmatprep.subr.mxu0 0.0
    %1333 = vmatpush1.msra.mxu0 0.0
    %1334 = vmatprep.subr.mxu0 0.0
    %1335 = vmatpush1.msra.mxu0 0.0
    %1336 = vmatprep.subr.mxu0 0.0
    %1337 = vmatpush1.msra.mxu0 0.0
    %1338 = vmatprep.subr.mxu0 0.0
    %1339 = vmatpush1.msra.mxu0 0.0
    %1340 = vmatprep.subr.mxu0 0.0
    %1341 = vmatpush1.msra.mxu0 0.0
    %1342 = vmatprep.subr.mxu0 0.0
    %1343 = vmatpush1.msra.mxu0 0.0
    %1344 = vmatprep.subr.mxu0 0.0
    %1345 = vmatpush1.msra.mxu0 0.0
    %1346 = vmatprep.subr.mxu0 0.0
    %1347 = vmatpush1.msra.mxu0 0.0
    %1348 = vmatprep.subr.mxu0 0.0
    %1349 = vmatpush1.msra.mxu0 0.0
    %1350 = vmatprep.subr.mxu0 0.0
    %1351 = vmatpush1.msra.mxu0 0.0
    %1352 = vmatprep.subr.mxu0 0.0
    %1353 = vmatpush1.msra.mxu0 0.0
    %1354 = vmatprep.subr.mxu0 0.0
    %1355 = vmatpush1.msra.mxu0 0.0
    %1356 = vmatprep.subr.mxu0 0.0
    %1357 = vmatpush1.msra.mxu0 0.0
    %1358 = vmatprep.subr.mxu0 0.0
    %1359 = vmatpush1.msra.mxu0 0.0
    %1360 = vmatprep.subr.mxu0 0.0
    %1361 = vmatpush1.msra.mxu0 0.0
    %1362 = vmatprep.subr.mxu0 0.0
    %1363 = vmatpush1.msra.mxu0 0.0
    %1364 = vmatprep.subr.mxu0 0.0
    %1365 = vmatpush1.msra.mxu0 0.0
    %1366 = vmatprep.subr.mxu0 0.0
    %1367 = vmatpush1.msra.mxu0 0.0
    %1368 = vmatprep.subr.mxu0 0.0
    %1369 = vmatpush1.msra.mxu0 0.0
    %1370 = vmatprep.subr.mxu0 0.0
    %1371 = vmatpush1.msra.mxu0 0.0
    %1372 = vmatprep.subr.mxu0 0.0
    %1373 = vmatpush1.msra.mxu0 0.0
    %1374 = vmatprep.subr.mxu0 0.0
    %1375 = vmatpush1.msra.mxu0 0.0
    %1376 = vmatprep.subr.mxu0 0.0
    %1377 = vmatpush1.msra.mxu0 0.0
    %1378 = vmatprep.subr.mxu0 0.0
    %1379 = vmatpush1.msra.mxu0 0.0
    %1380 = vmatprep.subr.mxu0 0.0
    %1381 = vmatpush1.msra.mxu0 0.0
    %1382 = vmatprep.subr.mxu0 0.0
    %1383 = vmatpush1.msra.mxu0 0.0
    %1384 = vmatprep.subr.mxu0 0.0
    %1385 = vmatpush1.msra.mxu0 0.0
    %1386 = vmatprep.subr.mxu0 0.0
    %1387 = vmatpush1.msra.mxu0 0.0
    %1388 = vmatprep.mubr.f32.mxu0 0.0
    %1389 = vmatmul.mubr.f32.gmra.mrb[0].mxu0 %v249
    %v1390 = vpop.f32.mrb[0].mxu0
    %v1391 = vadd.f32 0.0, %v1390
    %v1392 = vpop.f32.mrb[0].mxu0
    %1393 = vdwg.mxu0
    %v1394 = vmul.f32 %v1391, 0.125
    %v1395 = vlaneseq
    %v1396 = vshrl.u32 %v1395, 7
    %v1397 = vsub.s32 0, %v1396
    %v1398 = vrot.slane %v1394, %v1397
    %v1399 = vsub.f32 %v1319, %v1398
    %v1400 = vmul.f32 %v1399, %v1399
    %1401 = vmatprep.subr.mxu0 0.0
    %1402 = vmatpush1.msra.mxu0 %v1400
    %1403 = vmatprep.subr.mxu0 0.0
    %1404 = vmatpush1.msra.mxu0 0.0
    %1405 = vmatprep.subr.mxu0 0.0
    %1406 = vmatpush1.msra.mxu0 0.0
    %1407 = vmatprep.subr.mxu0 0.0
    %1408 = vmatpush1.msra.mxu0 0.0
    %1409 = vmatprep.subr.mxu0 0.0
    %1410 = vmatpush1.msra.mxu0 0.0
    %1411 = vmatprep.subr.mxu0 0.0
    %1412 = vmatpush1.msra.mxu0 0.0
    %1413 = vmatprep.subr.mxu0 0.0
    %1414 = vmatpush1.msra.mxu0 0.0
    %1415 = vmatprep.subr.mxu0 0.0
    %1416 = vmatpush1.msra.mxu0 0.0
    %1417 = vmatprep.subr.mxu0 0.0
    %1418 = vmatpush1.msra.mxu0 0.0
    %1419 = vmatprep.subr.mxu0 0.0
    %1420 = vmatpush1.msra.mxu0 0.0
    %1421 = vmatprep.subr.mxu0 0.0
    %1422 = vmatpush1.msra.mxu0 0.0
    %1423 = vmatprep.subr.mxu0 0.0
    %1424 = vmatpush1.msra.mxu0 0.0
    %1425 = vmatprep.subr.mxu0 0.0
    %1426 = vmatpush1.msra.mxu0 0.0
    %1427 = vmatprep.subr.mxu0 0.0
    %1428 = vmatpush1.msra.mxu0 0.0
    %1429 = vmatprep.subr.mxu0 0.0
    %1430 = vmatpush1.msra.mxu0 0.0
    %1431 = vmatprep.subr.mxu0 0.0
    %1432 = vmatpush1.msra.mxu0 0.0
    %1433 = vmatprep.subr.mxu0 0.0
    %1434 = vmatpush1.msra.mxu0 0.0
    %1435 = vmatprep.subr.mxu0 0.0
    %1436 = vmatpush1.msra.mxu0 0.0
    %1437 = vmatprep.subr.mxu0 0.0
    %1438 = vmatpush1.msra.mxu0 0.0
    %1439 = vmatprep.subr.mxu0 0.0
    %1440 = vmatpush1.msra.mxu0 0.0
    %1441 = vmatprep.subr.mxu0 0.0
    %1442 = vmatpush1.msra.mxu0 0.0
    %1443 = vmatprep.subr.mxu0 0.0
    %1444 = vmatpush1.msra.mxu0 0.0
    %1445 = vmatprep.subr.mxu0 0.0
    %1446 = vmatpush1.msra.mxu0 0.0
    %1447 = vmatprep.subr.mxu0 0.0
    %1448 = vmatpush1.msra.mxu0 0.0
    %1449 = vmatprep.subr.mxu0 0.0
    %1450 = vmatpush1.msra.mxu0 0.0
    %1451 = vmatprep.subr.mxu0 0.0
    %1452 = vmatpush1.msra.mxu0 0.0
    %1453 = vmatprep.subr.mxu0 0.0
    %1454 = vmatpush1.msra.mxu0 0.0
    %1455 = vmatprep.subr.mxu0 0.0
    %1456 = vmatpush1.msra.mxu0 0.0
    %1457 = vmatprep.subr.mxu0 0.0
    %1458 = vmatpush1.msra.mxu0 0.0
    %1459 = vmatprep.subr.mxu0 0.0
    %1460 = vmatpush1.msra.mxu0 0.0
    %1461 = vmatprep.subr.mxu0 0.0
    %1462 = vmatpush1.msra.mxu0 0.0
    %1463 = vmatprep.subr.mxu0 0.0
    %1464 = vmatpush1.msra.mxu0 0.0
    %1465 = vmatprep.mubr.f32.mxu0 0.0
    %1466 = vmatmul.mubr.f32.gmra.mrb[0].mxu0 %v249
    %v1467 = vpop.f32.mrb[0].mxu0
    %v1468 = vadd.f32 0.0, %v1467
    %v1469 = vpop.f32.mrb[0].mxu0
    %1470 = vdwg.mxu0
    %v1471 = vmul.f32 %v1468, 0.125
    %v1472 = vadd.f32 %v1471, 1e-05
    %v1473 = vrsqrt.pop %v1472
    %v1474 = vlaneseq
    %v1475 = vshrl.u32 %v1474, 7
    %v1476 = vsub.s32 0, %v1475
    %v1477 = vrot.slane %v1473, %v1476
    %v1478 = vmul.f32 %v1399, %v1477
    %v1479 = vmax.f32 %v1478, 0.0
    %v1480 = vpack.c.bf16 %v1479, %v1479
    %v1481 = vld [vmem:[#allocation11] sm:$0xff]
    %v1482 = vld [vmem:[#allocation11 + $0x8] sm:$0xff]
    %v1483 = vld [vmem:[#allocation11 + $0x10] sm:$0xff]
    %v1484 = vld [vmem:[#allocation11 + $0x18] sm:$0xff]
    %v1485 = vld [vmem:[#allocation11 + $0x20] sm:$0xff]
    %v1486 = vld [vmem:[#allocation11 + $0x28] sm:$0xff]
    %v1487 = vld [vmem:[#allocation11 + $0x30] sm:$0xff]
    %v1488 = vld [vmem:[#allocation11 + $0x38] sm:$0xff]
    %v1489 = vld [vmem:[#allocation11 + $0x40] sm:$0xff]
    %v1490 = vld [vmem:[#allocation11 + $0x48] sm:$0xff]
    %v1491 = vld [vmem:[#allocation11 + $0x50] sm:$0xff]
    %v1492 = vld [vmem:[#allocation11 + $0x58] sm:$0xff]
    %v1493 = vld [vmem:[#allocation11 + $0x60] sm:$0xff]
    %v1494 = vld [vmem:[#allocation11 + $0x68] sm:$0xff]
    %v1495 = vld [vmem:[#allocation11 + $0x70] sm:$0xff]
    %v1496 = vld [vmem:[#allocation11 + $0x78] sm:$0xff]
    %v1497 = vld [vmem:[%s13] sm:$0x3]
    %v1499 = vlaneseq
    %v1500 = vshrl.u32 %v1499, 7
    %v1501 = vsub.s32 0, %v1500
    %v1502 = vrot.slane %v1497, %v1501
    %v1503 = vlaneseq
    %v1504 = vshrl.u32 %v1503, 7
    %v1505 = vsub.s32 1, %v1504
    %v1506 = vrot.slane %v1497, %v1505
    %v1525 = vunpack.c.l.b16 %v1481
    %v1526 = vunpack.c.h.b16 %v1481
    %v1527 = vunpack.c.l.b16 %v1482
    %v1528 = vunpack.c.h.b16 %v1482
    %v1529 = vunpack.c.l.b16 %v1483
    %v1530 = vunpack.c.h.b16 %v1483
    %v1531 = vunpack.c.l.b16 %v1484
    %v1532 = vunpack.c.h.b16 %v1484
    %v1533 = vunpack.c.l.b16 %v1485
    %v1534 = vunpack.c.h.b16 %v1485
    %v1535 = vunpack.c.l.b16 %v1486
    %v1536 = vunpack.c.h.b16 %v1486
    %v1537 = vunpack.c.l.b16 %v1487
    %v1538 = vunpack.c.h.b16 %v1487
    %v1539 = vunpack.c.l.b16 %v1488
    %v1540 = vunpack.c.h.b16 %v1488
    %v1541 = vunpack.c.l.b16 %v1489
    %v1542 = vunpack.c.h.b16 %v1489
    %v1543 = vunpack.c.l.b16 %v1490
    %v1544 = vunpack.c.h.b16 %v1490
    %v1545 = vunpack.c.l.b16 %v1491
    %v1546 = vunpack.c.h.b16 %v1491
    %v1547 = vunpack.c.l.b16 %v1492
    %v1548 = vunpack.c.h.b16 %v1492
    %v1549 = vunpack.c.l.b16 %v1493
    %v1550 = vunpack.c.h.b16 %v1493
    %v1551 = vunpack.c.l.b16 %v1494
    %v1552 = vunpack.c.h.b16 %v1494
    %v1553 = vunpack.c.l.b16 %v1495
    %v1554 = vunpack.c.h.b16 %v1495
    %v1555 = vunpack.c.l.b16 %v1496
    %v1556 = vunpack.c.h.b16 %v1496
    %v1557 = vpack.c.b16 %v1527, %v1525
    %v1558 = vpack.c.b16 %v1528, %v1526
    %v1559 = vpack.c.b16 %v1531, %v1529
    %v1560 = vpack.c.b16 %v1532, %v1530
    %v1561 = vpack.c.b16 %v1535, %v1533
    %v1562 = vpack.c.b16 %v1536, %v1534
    %v1563 = vpack.c.b16 %v1539, %v1537
    %v1564 = vpack.c.b16 %v1540, %v1538
    %v1565 = vpack.c.b16 %v1543, %v1541
    %v1566 = vpack.c.b16 %v1544, %v1542
    %v1567 = vpack.c.b16 %v1547, %v1545
    %v1568 = vpack.c.b16 %v1548, %v1546
    %v1569 = vpack.c.b16 %v1551, %v1549
    %v1570 = vpack.c.b16 %v1552, %v1550
    %v1571 = vpack.c.b16 %v1555, %v1553
    %v1572 = vpack.c.b16 %v1556, %v1554
    %1589 = vmatprep.subr.bf16.mxu0 %v1558
    %1590 = vmatpush1.bf16.msra.mxu0 %v1557
    %1591 = vmatprep.subr.bf16.mxu0 %v1560
    %1592 = vmatpush1.bf16.msra.mxu0 %v1559
    %1593 = vmatprep.subr.bf16.mxu0 %v1562
    %1594 = vmatpush1.bf16.msra.mxu0 %v1561
    %1595 = vmatprep.subr.bf16.mxu0 %v1564
    %1596 = vmatpush1.bf16.msra.mxu0 %v1563
    %1597 = vmatprep.subr.bf16.mxu0 %v1566
    %1598 = vmatpush1.bf16.msra.mxu0 %v1565
    %1599 = vmatprep.subr.bf16.mxu0 %v1568
    %1600 = vmatpush1.bf16.msra.mxu0 %v1567
    %1601 = vmatprep.subr.bf16.mxu0 %v1570
    %1602 = vmatpush1.bf16.msra.mxu0 %v1569
    %1603 = vmatprep.subr.bf16.mxu0 %v1572
    %1604 = vmatpush1.bf16.msra.mxu0 %v1571
    %1605 = vmatprep.subr.bf16.mxu0 0
    %1606 = vmatpush1.bf16.msra.mxu0 0
    %1607 = vmatprep.subr.bf16.mxu0 0
    %1608 = vmatpush1.bf16.msra.mxu0 0
    %1609 = vmatprep.subr.bf16.mxu0 0
    %1610 = vmatpush1.bf16.msra.mxu0 0
    %1611 = vmatprep.subr.bf16.mxu0 0
    %1612 = vmatpush1.bf16.msra.mxu0 0
    %1613 = vmatprep.subr.bf16.mxu0 0
    %1614 = vmatpush1.bf16.msra.mxu0 0
    %1615 = vmatprep.subr.bf16.mxu0 0
    %1616 = vmatpush1.bf16.msra.mxu0 0
    %1617 = vmatprep.subr.bf16.mxu0 0
    %1618 = vmatpush1.bf16.msra.mxu0 0
    %1619 = vmatprep.subr.bf16.mxu0 0
    %1620 = vmatpush1.bf16.msra.mxu0 0
    %1621 = vmatprep.mubr.bf16.mxu0 0
    %1622 = vmatmul.mubr.bf16.gmra.mrb[0].mxu0 %v1480
    %v1623 = vpop.f32.mrb[0].mxu0
    %v1624 = vadd.f32 %v1502, %v1623
    %v1625 = vpop.f32.mrb[0].mxu0
    %v1626 = vadd.f32 %v1506, %v1625
    %v1627 = vpop.f32.mrb[0].mxu0
    %v1628 = vpop.f32.mrb[0].mxu0
    %1629 = vdwg.mxu0
    %v1630 = vmul.f32 %v1624, 1.442695
    %v1631 = vpow.pop %v1630
    %v1632 = vld [vmem:[%s1] sm:$0xff]
    %1634 = vset.pattern.permute.xlu0 0
    %1635 = vperm.xlu0 %1634, %v1632
    %v1636 = vpop.permute.xlu0 %1635
    %v1638 = vmul.f32 %v1631, %v1636
    %v1639 = vmin.f32 %v1626, 20.0
    %v1640 = vmul.f32 %v1639, 1.442695
    %v1641 = vpow.pop %v1640
    %v1642 = vadd.f32 %v1641, 1.0
    %v1643 = vlog2.pop %v1642
    %v1644 = vmul.f32 %v1643, 0.6931472
    %v1645 = vmul.f32 -0.5, %v1641
    %v1646 = vadd.f32 %v1645, 1.0
    %v1647 = vmul.f32 %v1646, %v1641
    %v1648 = vand.u32 2147483647, %v1641
    %vm1649 = vcmp.lt.f32.partialorder %v1648, 0.0004427343
    %v1650 = vsel %vm1649, %v1647, %v1644
    %vm1651 = vcmp.gt.f32.partialorder %v1626, 20.0
    %v1652 = vsel %vm1651, %v1626, %v1650
    %1653 = vst [vmem:[#allocation14] sm:$0xff] %v1638
    %1654 = vst [vmem:[#allocation14 + $0x8] sm:$0xff] %v1652
    // Predicated region
    $region82: #{tpu_custom_call.1} parent=1 // pred_check
      _
    $region83: #{tpu_custom_call.1} parent=1 // pred_check_branch
      %1656 = sbr.rel (0) target = $region85
    $region84: #{tpu_custom_call.1} parent=1 // pred_region
      %s1658 = ssub.s32 128, 128
      %1659 = vsyncadd [#allocation4], %s1658
      %s1661 = sshll.u32 [#allocation13], 4
      %s1662 = int_to_ptr.vmem [resolvable:$true] %s1661
      %1664 = dma.vmem_to_hbm [thread:$0]  %s1662, 128, %s14, [#allocation4]
    $region85: #{tpu_custom_call.1} parent=1 // pred_fallthru
      _
    // Predicated region
    $region86: #{tpu_custom_call.1} parent=1 // pred_check
      _
    $region87: #{tpu_custom_call.1} parent=1 // pred_check_branch
      %1666 = sbr.rel (0) target = $region89
    $region88: #{tpu_custom_call.1} parent=1 // pred_region
      %s1668 = ssub.s32 256, 256
      %1669 = vsyncadd [#allocation15], %s1668
      %s1671 = sshll.u32 [#allocation14], 4
      %s1672 = int_to_ptr.vmem [resolvable:$true] %s1671
      %1674 = dma.vmem_to_hbm [thread:$0]  %s1672, 256, %s15, [#allocation15]
    $region89: #{tpu_custom_call.1} parent=1 // pred_fallthru
      _
    // Predicated region
    $region90: #{tpu_custom_call.1} parent=1 // pred_check
      _
    $region91: #{tpu_custom_call.1} parent=1 // pred_check_branch
      %1676 = sbr.rel (0) target = $region93
    $region92: #{tpu_custom_call.1} parent=1 // pred_region
      %1677 = dma.done [#allocation4], 128
    $region93: #{tpu_custom_call.1} parent=1 // pred_fallthru
      _
    // Predicated region
    $region94: #{tpu_custom_call.1} parent=1 // pred_check
      _
    $region95: #{tpu_custom_call.1} parent=1 // pred_check_branch
      %1679 = sbr.rel (0) target = $region97
    $region96: #{tpu_custom_call.1} parent=1 // pred_region
      %1680 = dma.done [#allocation15], 256
    $region97: #{tpu_custom_call.1} parent=1 // pred_fallthru
      _
    %1681 = vsyncpa [#allocation3], 1
    %1682 = vsyncpa [#allocation6], 1
    %1683 = vsyncpa [#allocation9], 1
    %1684 = vsyncpa [#allocation12], 1
    %1685 = vsyncpa [#allocation4], 1
    %1686 = vsyncpa [#allocation15], 1

</llo_original>
